<compile_context>
chip_gen: v6e
topology: v6e:2x2x1
jax: 0.10.0
libtpu: 0.0.40
codegen_flags: <defaults>
</compile_context>

<pallas_src>
import math

import jax
import jax.numpy as jnp
from jax.experimental import pallas as pl
from jax.experimental.pallas import tpu as pltpu


NEG_SLOPE = 0.1  # nn.LeakyReLU(0.1) in the PyTorch Critic


def leaky_relu(x, slope=NEG_SLOPE):
    return jnp.where(x > 0, x, slope * x)


# ---------------------------------------------------------------------------
# Kernel: one batch tile per grid step.  All activations are [feat, TM].
# ---------------------------------------------------------------------------
def critic_kernel(state_ref, action_ref,
                  ws1_ref, bs1_ref,
                  ws2_ref, bs2_ref,
                  wa1_ref, ba1_ref,
                  w2_ref, b2_ref,
                  w3_ref, b3_ref,
                  w4_ref, b4_ref,
                  out_ref):
    st = state_ref[...]          # (state_dim, TM)
    ac = action_ref[...]         # (action_dim, TM)

    # s1 = leaky_relu(fcs1(state))                       (256, TM)
    s1 = leaky_relu(
        jnp.dot(ws1_ref[...], st, preferred_element_type=jnp.float32)
        + bs1_ref[...])
    # s2 = leaky_relu(fcs2(s1))                          (128, TM)
    s2 = leaky_relu(
        jnp.dot(ws2_ref[...], s1, preferred_element_type=jnp.float32)
        + bs2_ref[...])
    # a1 = leaky_relu(fca1(action))                      (128, TM)
    a1 = leaky_relu(
        jnp.dot(wa1_ref[...], ac, preferred_element_type=jnp.float32)
        + ba1_ref[...])

    # torch.cat((s2, a1), dim=1)  ->  concat along the feature (sublane) axis,
    # then ONE fused K=256 matmul for fc2.
    sa = jnp.concatenate([s2, a1], axis=0)               # (256, TM)
    x = leaky_relu(
        jnp.dot(w2_ref[...], sa, preferred_element_type=jnp.float32)
        + b2_ref[...])                                   # (128, TM)

    # fc3, zero-padded to 128 output features (rows 32..127 are exactly 0).
    x = leaky_relu(
        jnp.dot(w3_ref[...], x, preferred_element_type=jnp.float32)
        + b3_ref[...])                                   # (128, TM)

    # fc4: [*,32] -> [*,1] done on the VPU/XLU (broadcast-multiply + sublane
    # reduce) instead of an N=1 MXU matmul; result is a lane-dense (1, TM) row.
    q = jnp.sum(x * w4_ref[...], axis=0, keepdims=True) + b4_ref[...]
    out_ref[...] = q.astype(out_ref.dtype)


# ---------------------------------------------------------------------------
# Parameter init (PyTorch-native [out, in] layout, matching the nn.Module)
# ---------------------------------------------------------------------------
def xavier_uniform(key, out_dim, in_dim):
    # matches nn.init.xavier_uniform_ (gain=1) on a [out, in] weight
    limit = math.sqrt(6.0 / (in_dim + out_dim))
    return jax.random.uniform(key, (out_dim, in_dim), jnp.float32,
                              minval=-limit, maxval=limit)


def linear_bias(key, out_dim, in_dim):
    # PyTorch default nn.Linear bias init: U(-1/sqrt(fan_in), 1/sqrt(fan_in))
    bound = 1.0 / math.sqrt(in_dim)
    return jax.random.uniform(key, (out_dim,), jnp.float32,
                              minval=-bound, maxval=bound)


def init_critic_params(state_dim, action_dim, seed=0):
    keys = jax.random.split(jax.random.PRNGKey(seed), 12)
    return {
        "ws1": xavier_uniform(keys[0], 256, state_dim),
        "bs1": linear_bias(keys[1], 256, state_dim),
        "ws2": xavier_uniform(keys[2], 128, 256),
        "bs2": linear_bias(keys[3], 128, 256),
        "wa1": xavier_uniform(keys[4], 128, action_dim),
        "ba1": linear_bias(keys[5], 128, action_dim),
        "w2":  xavier_uniform(keys[6], 128, 256),
        "b2":  linear_bias(keys[7], 128, 256),
        "w3":  xavier_uniform(keys[8], 32, 128),
        "b3":  linear_bias(keys[9], 32, 128),
        "w4":  xavier_uniform(keys[10], 1, 32),
        "b4":  linear_bias(keys[11], 1, 32),
    }


# ---------------------------------------------------------------------------
# Wrapper
# ---------------------------------------------------------------------------
def critic_forward(state, action, params, *, tile_m=256):
    n, state_dim = state.shape
    action_dim = action.shape[1]

    num_tiles = pl.cdiv(n, tile_m)
    n_pad = num_tiles * tile_m

    # Transposed, zero-padded inputs: [features, n_pad]  (batch along lanes).
    state_t = jnp.zeros((state_dim, n_pad), jnp.float32).at[:, :n].set(state.T)
    action_t = jnp.zeros((action_dim, n_pad), jnp.float32).at[:, :n].set(action.T)

    col = lambda b: b.reshape(-1, 1)

    # fc3 / fc4 zero-padded to a full 128-wide feature dimension.
    w3p = jnp.zeros((128, 128), jnp.float32).at[:32, :].set(params["w3"])
    b3p = jnp.zeros((128, 1), jnp.float32).at[:32, 0].set(params["b3"])
    w4c = jnp.zeros((128, 1), jnp.float32).at[:32, 0].set(params["w4"][0])
    b4 = params["b4"].reshape(1, 1)

    inputs = (
        state_t, action_t,
        params["ws1"], col(params["bs1"]),
        params["ws2"], col(params["bs2"]),
        params["wa1"], col(params["ba1"]),
        params["w2"], col(params["b2"]),
        w3p, b3p,
        w4c, b4,
    )

    def batch_spec(feat):
        # batch-tiled operand: block index advances along lanes
        return pl.BlockSpec((feat, tile_m), lambda i: (0, i))

    def resident_spec(arr):
        # weight/bias: constant block index -> DMA'd once, VMEM-resident
        return pl.BlockSpec(arr.shape, lambda i: (0, 0))

    in_specs = [batch_spec(state_dim), batch_spec(action_dim)]
    in_specs += [resident_spec(a) for a in inputs[2:]]

    # Advisory cost estimate for XLA's scheduler.
    flops = 2 * n_pad * (state_dim * 256 + 256 * 128 + action_dim * 128
                         + 256 * 128 + 128 * 128 + 128)
    weight_bytes = 4 * sum(int(a.size) for a in inputs[2:])
    bytes_accessed = 4 * n_pad * (state_dim + action_dim + 1) + weight_bytes

    out = pl.pallas_call(
        critic_kernel,
        out_shape=jax.ShapeDtypeStruct((1, n_pad), jnp.float32),
        grid=(num_tiles,),
        in_specs=in_specs,
        out_specs=pl.BlockSpec((1, tile_m), lambda i: (0, i)),
        compiler_params=pltpu.CompilerParams(
            dimension_semantics=("parallel",)),
        cost_estimate=pl.CostEstimate(flops=int(flops), transcendentals=0,
                                      bytes_accessed=int(bytes_accessed)),
    )(*inputs)

    # Lane-dense (1, n_pad) kernel output -> (n, 1) column, as in the module.
    return out[0, :n].reshape(n, 1)


# ---------------------------------------------------------------------------
# Plain-JAX reference (mirrors the PyTorch forward exactly)
# ---------------------------------------------------------------------------
def critic_ref(state, action, params):
    s1 = leaky_relu(state @ params["ws1"].T + params["bs1"])
    s2 = leaky_relu(s1 @ params["ws2"].T + params["bs2"])
    a1 = leaky_relu(action @ params["wa1"].T + params["ba1"])
    x = jnp.concatenate([s2, a1], axis=1)
    x = leaky_relu(x @ params["w2"].T + params["b2"])
    x = leaky_relu(x @ params["w3"].T + params["b3"])
    return x @ params["w4"].T + params["b4"]


if __name__ == "__main__":
    state_dim, action_dim, batch = 16, 4, 8

    key = jax.random.PRNGKey(0)
    k_state, k_action = jax.random.split(key)
    state = jax.random.normal(k_state, (batch, state_dim), jnp.float32)
    action = jax.random.normal(k_action, (batch, action_dim), jnp.float32)

    params = init_critic_params(state_dim, action_dim, seed=0)

    q = critic_forward(state, action, params)
    q = jax.block_until_ready(q)

    q_ref = critic_ref(state, action, params)
    assert q.shape == (batch, 1)
    assert jnp.allclose(q, q_ref, atol=1e-4, rtol=1e-4), (q, q_ref)

    print("KERNEL_OK")
</pallas_src>

<mosaic_0001>
module attributes {stable_mosaic.version = 11 : i64} {
  func.func @critic_kernel(%arg0: i32, %arg1: memref<16x256xf32, #tpu.memory_space<vmem>>, %arg2: memref<4x256xf32, #tpu.memory_space<vmem>>, %arg3: memref<256x16xf32, #tpu.memory_space<vmem>>, %arg4: memref<256x1xf32, #tpu.memory_space<vmem>>, %arg5: memref<128x256xf32, #tpu.memory_space<vmem>>, %arg6: memref<128x1xf32, #tpu.memory_space<vmem>>, %arg7: memref<128x4xf32, #tpu.memory_space<vmem>>, %arg8: memref<128x1xf32, #tpu.memory_space<vmem>>, %arg9: memref<128x256xf32, #tpu.memory_space<vmem>>, %arg10: memref<128x1xf32, #tpu.memory_space<vmem>>, %arg11: memref<128x128xf32, #tpu.memory_space<vmem>>, %arg12: memref<128x1xf32, #tpu.memory_space<vmem>>, %arg13: memref<128x1xf32, #tpu.memory_space<vmem>>, %arg14: memref<1x1xf32, #tpu.memory_space<vmem>>, %arg15: memref<1x256xf32, #tpu.memory_space<vmem>>) attributes {dimension_semantics = [#tpu.dimension_semantics<parallel>], iteration_bounds = array<i64: 1>, scalar_prefetch = 0 : i64, scratch_operands = 0 : i64, tpu.core_type = #tpu.core_type<tc>, window_params = [{transform_indices = @transform_0, window_bounds = array<i64: 16, 256>}, {transform_indices = @transform_1, window_bounds = array<i64: 4, 256>}, {pipeline_mode = #tpu.pipeline_mode<synchronous>, transform_indices = @transform_2, window_bounds = array<i64: 256, 16>}, {pipeline_mode = #tpu.pipeline_mode<synchronous>, transform_indices = @transform_3, window_bounds = array<i64: 256, 1>}, {pipeline_mode = #tpu.pipeline_mode<synchronous>, transform_indices = @transform_4, window_bounds = array<i64: 128, 256>}, {pipeline_mode = #tpu.pipeline_mode<synchronous>, transform_indices = @transform_5, window_bounds = array<i64: 128, 1>}, {pipeline_mode = #tpu.pipeline_mode<synchronous>, transform_indices = @transform_6, window_bounds = array<i64: 128, 4>}, {pipeline_mode = #tpu.pipeline_mode<synchronous>, transform_indices = @transform_7, window_bounds = array<i64: 128, 1>}, {pipeline_mode = #tpu.pipeline_mode<synchronous>, transform_indices = @transform_8, window_bounds = array<i64: 128, 256>}, {pipeline_mode = #tpu.pipeline_mode<synchronous>, transform_indices = @transform_9, window_bounds = array<i64: 128, 1>}, {pipeline_mode = #tpu.pipeline_mode<synchronous>, transform_indices = @transform_10, window_bounds = array<i64: 128, 128>}, {pipeline_mode = #tpu.pipeline_mode<synchronous>, transform_indices = @transform_11, window_bounds = array<i64: 128, 1>}, {pipeline_mode = #tpu.pipeline_mode<synchronous>, transform_indices = @transform_12, window_bounds = array<i64: 128, 1>}, {pipeline_mode = #tpu.pipeline_mode<synchronous>, transform_indices = @transform_13, window_bounds = array<i64: 1, 1>}, {transform_indices = @transform_14, window_bounds = array<i64: 1, 256>}]} {
    %c0 = arith.constant 0 : index
    %c0_0 = arith.constant 0 : index
    %0 = vector.load %arg1[%c0, %c0_0] : memref<16x256xf32, #tpu.memory_space<vmem>>, vector<16x256xf32>
    %c0_1 = arith.constant 0 : index
    %c0_2 = arith.constant 0 : index
    %1 = vector.load %arg2[%c0_1, %c0_2] : memref<4x256xf32, #tpu.memory_space<vmem>>, vector<4x256xf32>
    %c0_3 = arith.constant 0 : index
    %c0_4 = arith.constant 0 : index
    %2 = vector.load %arg3[%c0_3, %c0_4] : memref<256x16xf32, #tpu.memory_space<vmem>>, vector<256x16xf32>
    %cst = arith.constant dense<0.000000e+00> : vector<256x256xf32>
    %3 = tpu.matmul %2, %0, %cst {dimension_numbers = #tpu.dot_dimension_numbers<[1], [0], [0], [1], [0, 0, 1, 1], [], []>} : vector<256x16xf32>, vector<16x256xf32>, vector<256x256xf32> -> vector<256x256xf32>
    %c0_5 = arith.constant 0 : index
    %c0_6 = arith.constant 0 : index
    %4 = vector.load %arg4[%c0_5, %c0_6] : memref<256x1xf32, #tpu.memory_space<vmem>>, vector<256x1xf32>
    %5 = vector.broadcast %4 : vector<256x1xf32> to vector<256x256xf32>
    %6 = arith.addf %3, %5 : vector<256x256xf32>
    %cst_7 = arith.constant 0.000000e+00 : f32
    %7 = vector.broadcast %cst_7 : f32 to vector<256x256xf32>
    %8 = arith.cmpf ogt, %6, %7 : vector<256x256xf32>
    %cst_8 = arith.constant 1.000000e-01 : f32
    %9 = vector.broadcast %cst_8 : f32 to vector<256x256xf32>
    %10 = arith.mulf %9, %6 : vector<256x256xf32>
    %11 = arith.select %8, %6, %10 : vector<256x256xi1>, vector<256x256xf32>
    %c0_9 = arith.constant 0 : index
    %c0_10 = arith.constant 0 : index
    %12 = vector.load %arg5[%c0_9, %c0_10] : memref<128x256xf32, #tpu.memory_space<vmem>>, vector<128x256xf32>
    %cst_11 = arith.constant dense<0.000000e+00> : vector<128x256xf32>
    %13 = tpu.matmul %12, %11, %cst_11 {dimension_numbers = #tpu.dot_dimension_numbers<[1], [0], [0], [1], [0, 0, 1, 1], [], []>} : vector<128x256xf32>, vector<256x256xf32>, vector<128x256xf32> -> vector<128x256xf32>
    %c0_12 = arith.constant 0 : index
    %c0_13 = arith.constant 0 : index
    %14 = vector.load %arg6[%c0_12, %c0_13] : memref<128x1xf32, #tpu.memory_space<vmem>>, vector<128x1xf32>
    %15 = vector.broadcast %14 : vector<128x1xf32> to vector<128x256xf32>
    %16 = arith.addf %13, %15 : vector<128x256xf32>
    %cst_14 = arith.constant 0.000000e+00 : f32
    %17 = vector.broadcast %cst_14 : f32 to vector<128x256xf32>
    %18 = arith.cmpf ogt, %16, %17 : vector<128x256xf32>
    %cst_15 = arith.constant 1.000000e-01 : f32
    %19 = vector.broadcast %cst_15 : f32 to vector<128x256xf32>
    %20 = arith.mulf %19, %16 : vector<128x256xf32>
    %21 = arith.select %18, %16, %20 : vector<128x256xi1>, vector<128x256xf32>
    %c0_16 = arith.constant 0 : index
    %c0_17 = arith.constant 0 : index
    %22 = vector.load %arg7[%c0_16, %c0_17] : memref<128x4xf32, #tpu.memory_space<vmem>>, vector<128x4xf32>
    %cst_18 = arith.constant dense<0.000000e+00> : vector<128x256xf32>
    %23 = tpu.matmul %22, %1, %cst_18 {dimension_numbers = #tpu.dot_dimension_numbers<[1], [0], [0], [1], [0, 0, 1, 1], [], []>} : vector<128x4xf32>, vector<4x256xf32>, vector<128x256xf32> -> vector<128x256xf32>
    %c0_19 = arith.constant 0 : index
    %c0_20 = arith.constant 0 : index
    %24 = vector.load %arg8[%c0_19, %c0_20] : memref<128x1xf32, #tpu.memory_space<vmem>>, vector<128x1xf32>
    %25 = vector.broadcast %24 : vector<128x1xf32> to vector<128x256xf32>
    %26 = arith.addf %23, %25 : vector<128x256xf32>
    %cst_21 = arith.constant 0.000000e+00 : f32
    %27 = vector.broadcast %cst_21 : f32 to vector<128x256xf32>
    %28 = arith.cmpf ogt, %26, %27 : vector<128x256xf32>
    %cst_22 = arith.constant 1.000000e-01 : f32
    %29 = vector.broadcast %cst_22 : f32 to vector<128x256xf32>
    %30 = arith.mulf %29, %26 : vector<128x256xf32>
    %31 = arith.select %28, %26, %30 : vector<128x256xi1>, vector<128x256xf32>
    %32 = tpu.concatenate %21, %31 in 0 : vector<128x256xf32>, vector<128x256xf32> -> vector<256x256xf32>
    %c0_23 = arith.constant 0 : index
    %c0_24 = arith.constant 0 : index
    %33 = vector.load %arg9[%c0_23, %c0_24] : memref<128x256xf32, #tpu.memory_space<vmem>>, vector<128x256xf32>
    %cst_25 = arith.constant dense<0.000000e+00> : vector<128x256xf32>
    %34 = tpu.matmul %33, %32, %cst_25 {dimension_numbers = #tpu.dot_dimension_numbers<[1], [0], [0], [1], [0, 0, 1, 1], [], []>} : vector<128x256xf32>, vector<256x256xf32>, vector<128x256xf32> -> vector<128x256xf32>
    %c0_26 = arith.constant 0 : index
    %c0_27 = arith.constant 0 : index
    %35 = vector.load %arg10[%c0_26, %c0_27] : memref<128x1xf32, #tpu.memory_space<vmem>>, vector<128x1xf32>
    %36 = vector.broadcast %35 : vector<128x1xf32> to vector<128x256xf32>
    %37 = arith.addf %34, %36 : vector<128x256xf32>
    %cst_28 = arith.constant 0.000000e+00 : f32
    %38 = vector.broadcast %cst_28 : f32 to vector<128x256xf32>
    %39 = arith.cmpf ogt, %37, %38 : vector<128x256xf32>
    %cst_29 = arith.constant 1.000000e-01 : f32
    %40 = vector.broadcast %cst_29 : f32 to vector<128x256xf32>
    %41 = arith.mulf %40, %37 : vector<128x256xf32>
    %42 = arith.select %39, %37, %41 : vector<128x256xi1>, vector<128x256xf32>
    %c0_30 = arith.constant 0 : index
    %c0_31 = arith.constant 0 : index
    %43 = vector.load %arg11[%c0_30, %c0_31] : memref<128x128xf32, #tpu.memory_space<vmem>>, vector<128x128xf32>
    %cst_32 = arith.constant dense<0.000000e+00> : vector<128x256xf32>
    %44 = tpu.matmul %43, %42, %cst_32 {dimension_numbers = #tpu.dot_dimension_numbers<[1], [0], [0], [1], [0, 0, 1, 1], [], []>} : vector<128x128xf32>, vector<128x256xf32>, vector<128x256xf32> -> vector<128x256xf32>
    %c0_33 = arith.constant 0 : index
    %c0_34 = arith.constant 0 : index
    %45 = vector.load %arg12[%c0_33, %c0_34] : memref<128x1xf32, #tpu.memory_space<vmem>>, vector<128x1xf32>
    %46 = vector.broadcast %45 : vector<128x1xf32> to vector<128x256xf32>
    %47 = arith.addf %44, %46 : vector<128x256xf32>
    %cst_35 = arith.constant 0.000000e+00 : f32
    %48 = vector.broadcast %cst_35 : f32 to vector<128x256xf32>
    %49 = arith.cmpf ogt, %47, %48 : vector<128x256xf32>
    %cst_36 = arith.constant 1.000000e-01 : f32
    %50 = vector.broadcast %cst_36 : f32 to vector<128x256xf32>
    %51 = arith.mulf %50, %47 : vector<128x256xf32>
    %52 = arith.select %49, %47, %51 : vector<128x256xi1>, vector<128x256xf32>
    %c0_37 = arith.constant 0 : index
    %c0_38 = arith.constant 0 : index
    %53 = vector.load %arg13[%c0_37, %c0_38] : memref<128x1xf32, #tpu.memory_space<vmem>>, vector<128x1xf32>
    %54 = vector.broadcast %53 : vector<128x1xf32> to vector<128x256xf32>
    %55 = arith.mulf %52, %54 : vector<128x256xf32>
    %cst_39 = arith.constant dense<0.000000e+00> : vector<256xf32>
    %56 = vector.multi_reduction <add>, %55, %cst_39 [0] : vector<128x256xf32> to vector<256xf32>
    %57 = vector.shape_cast %56 : vector<256xf32> to vector<1x256xf32>
    %c0_40 = arith.constant 0 : index
    %c0_41 = arith.constant 0 : index
    %58 = vector.load %arg14[%c0_40, %c0_41] : memref<1x1xf32, #tpu.memory_space<vmem>>, vector<1x1xf32>
    %59 = vector.broadcast %58 : vector<1x1xf32> to vector<1x256xf32>
    %60 = arith.addf %57, %59 : vector<1x256xf32>
    %c0_42 = arith.constant 0 : index
    %c0_43 = arith.constant 0 : index
    %61 = vector.load %arg15[%c0_42, %c0_43] : memref<1x256xf32, #tpu.memory_space<vmem>>, vector<1x256xf32>
    tpu.vector_store %arg15[%c0_42, %c0_43], %60 {strides = array<i32>} : memref<1x256xf32, #tpu.memory_space<vmem>>, vector<1x256xf32>,
    return
  }
  func.func @transform_0(%arg0: i32) -> (i32, i32) {
    %c0_i32 = arith.constant 0 : i32
    %c0_i32_0 = arith.constant 0 : i32
    return %c0_i32, %arg0 : i32, i32
  }
  func.func @transform_1(%arg0: i32) -> (i32, i32) {
    %c0_i32 = arith.constant 0 : i32
    %c0_i32_0 = arith.constant 0 : i32
    return %c0_i32, %arg0 : i32, i32
  }
  func.func @transform_2(%arg0: i32) -> (i32, i32) {
    %c0_i32 = arith.constant 0 : i32
    %c0_i32_0 = arith.constant 0 : i32
    %c0_i32_1 = arith.constant 0 : i32
    return %c0_i32, %c0_i32_0 : i32, i32
  }
  func.func @transform_3(%arg0: i32) -> (i32, i32) {
    %c0_i32 = arith.constant 0 : i32
    %c0_i32_0 = arith.constant 0 : i32
    %c0_i32_1 = arith.constant 0 : i32
    return %c0_i32, %c0_i32_0 : i32, i32
  }
  func.func @transform_4(%arg0: i32) -> (i32, i32) {
    %c0_i32 = arith.constant 0 : i32
    %c0_i32_0 = arith.constant 0 : i32
    %c0_i32_1 = arith.constant 0 : i32
    return %c0_i32, %c0_i32_0 : i32, i32
  }
  func.func @transform_5(%arg0: i32) -> (i32, i32) {
    %c0_i32 = arith.constant 0 : i32
    %c0_i32_0 = arith.constant 0 : i32
    %c0_i32_1 = arith.constant 0 : i32
    return %c0_i32, %c0_i32_0 : i32, i32
  }
  func.func @transform_6(%arg0: i32) -> (i32, i32) {
    %c0_i32 = arith.constant 0 : i32
    %c0_i32_0 = arith.constant 0 : i32
    %c0_i32_1 = arith.constant 0 : i32
    return %c0_i32, %c0_i32_0 : i32, i32
  }
  func.func @transform_7(%arg0: i32) -> (i32, i32) {
    %c0_i32 = arith.constant 0 : i32
    %c0_i32_0 = arith.constant 0 : i32
    %c0_i32_1 = arith.constant 0 : i32
    return %c0_i32, %c0_i32_0 : i32, i32
  }
  func.func @transform_8(%arg0: i32) -> (i32, i32) {
    %c0_i32 = arith.constant 0 : i32
    %c0_i32_0 = arith.constant 0 : i32
    %c0_i32_1 = arith.constant 0 : i32
    return %c0_i32, %c0_i32_0 : i32, i32
  }
  func.func @transform_9(%arg0: i32) -> (i32, i32) {
    %c0_i32 = arith.constant 0 : i32
    %c0_i32_0 = arith.constant 0 : i32
    %c0_i32_1 = arith.constant 0 : i32
    return %c0_i32, %c0_i32_0 : i32, i32
  }
  func.func @transform_10(%arg0: i32) -> (i32, i32) {
    %c0_i32 = arith.constant 0 : i32
    %c0_i32_0 = arith.constant 0 : i32
    %c0_i32_1 = arith.constant 0 : i32
    return %c0_i32, %c0_i32_0 : i32, i32
  }
  func.func @transform_11(%arg0: i32) -> (i32, i32) {
    %c0_i32 = arith.constant 0 : i32
    %c0_i32_0 = arith.constant 0 : i32
    %c0_i32_1 = arith.constant 0 : i32
    return %c0_i32, %c0_i32_0 : i32, i32
  }
  func.func @transform_12(%arg0: i32) -> (i32, i32) {
    %c0_i32 = arith.constant 0 : i32
    %c0_i32_0 = arith.constant 0 : i32
    %c0_i32_1 = arith.constant 0 : i32
    return %c0_i32, %c0_i32_0 : i32, i32
  }
  func.func @transform_13(%arg0: i32) -> (i32, i32) {
    %c0_i32 = arith.constant 0 : i32
    %c0_i32_0 = arith.constant 0 : i32
    %c0_i32_1 = arith.constant 0 : i32
    return %c0_i32, %c0_i32_0 : i32, i32
  }
  func.func @transform_14(%arg0: i32) -> (i32, i32) {
    %c0_i32 = arith.constant 0 : i32
    %c0_i32_0 = arith.constant 0 : i32
    return %c0_i32, %arg0 : i32, i32
  }
}

</mosaic_0001>

<llo_original>
// kernel: tpu_custom_call.1
$region0: #{tpu_custom_call.1}
  #allocation0 [shape = 'u32[]', space=smem, size = 0x4, offset = 0x4, fixed_abs, tag = 'smem constant byte address 0x4 - core index']
  #allocation1 [shape = 'u32[144,128]{1,0:T(1,128)}', space=vmem, size = 0x12000, scoped, tag = 'internal scratch']
  #allocation2 [shape = 'f32[1,1]{1,0:T(1,128)S(1)}', space=vmem, size = 0x200, scoped, tag = 'scoped memory for tpu_custom_call.1']
  %s0 = inlined_call_operand.vmem [shape: f32[16,256], index: 0, kind: input, shape index: {}]
  %s1 = inlined_call_operand.vmem [shape: f32[4,256], index: 1, kind: input, shape index: {}]
  %s2 = inlined_call_operand.vmem [shape: f32[256,16], index: 2, kind: input, shape index: {}]
  %s3 = inlined_call_operand.vmem [shape: f32[256,1], index: 3, kind: input, shape index: {}]
  %s4 = inlined_call_operand.vmem [shape: f32[128,256], index: 4, kind: input, shape index: {}]
  %s5 = inlined_call_operand.vmem [shape: f32[128,1], index: 5, kind: input, shape index: {}]
  %s6 = inlined_call_operand.vmem [shape: f32[128,4], index: 6, kind: input, shape index: {}]
  %s7 = inlined_call_operand.vmem [shape: f32[128,1], index: 7, kind: input, shape index: {}]
  %s8 = inlined_call_operand.vmem [shape: f32[128,256], index: 8, kind: input, shape index: {}]
  %s9 = inlined_call_operand.vmem [shape: f32[128,1], index: 9, kind: input, shape index: {}]
  %s10 = inlined_call_operand.vmem [shape: f32[128,128], index: 10, kind: input, shape index: {}]
  %s11 = inlined_call_operand.vmem [shape: f32[128,1], index: 11, kind: input, shape index: {}]
  %s12 = inlined_call_operand.vmem [shape: f32[128,1], index: 12, kind: input, shape index: {}]
  %s13 = inlined_call_operand.<no memory space> [shape: f32[1,1], index: 13, kind: input, shape index: {}]
  %s14 = inlined_call_operand.hbm [shape: f32[1,256], index: 14, kind: output, shape index: {}]
  %s15 = sld [smem:[#allocation0]]
  $region66: #{tpu_custom_call.1} parent=0
    _
  %s17 = ssub.s32 1, %s15
  %s18 = scalar_select 0, %s17, %s15
  %v19 = vstv %s13
  %20 = vst [vmem:[#allocation2] sm:$0x1] %v19
  $region1: #{tpu_custom_call.1} parent=0
    #allocation3 [shape = 'u8[1024]{0}', space=vmem, size = 0x400, scoped, tag = 'output window, operand 0, single buffered']
    #allocation4 [shape = 's32[1]{0}', space=sflag, size = 0x4, scoped, tag = 'scoped memory for tpu_custom_call.1']
    %21 = vsyncpa [#allocation4], 0
    // Predicated region
    $region2: #{tpu_custom_call.1} parent=1 // pred_check
      _
    $region3: #{tpu_custom_call.1} parent=1 // pred_check_branch
      %23 = sbr.rel (0) target = $region5
    $region4: #{tpu_custom_call.1} parent=1 // pred_region
      _
    $region5: #{tpu_custom_call.1} parent=1 // pred_fallthru
      _
    // Predicated region
    $region6: #{tpu_custom_call.1} parent=1 // pred_check
      _
    $region7: #{tpu_custom_call.1} parent=1 // pred_check_branch
      %25 = sbr.rel (0) target = $region9
    $region8: #{tpu_custom_call.1} parent=1 // pred_region
      _
    $region9: #{tpu_custom_call.1} parent=1 // pred_fallthru
      _
    // Predicated region
    $region10: #{tpu_custom_call.1} parent=1 // pred_check
      _
    $region11: #{tpu_custom_call.1} parent=1 // pred_check_branch
      %27 = sbr.rel (0) target = $region13
    $region12: #{tpu_custom_call.1} parent=1 // pred_region
      _
    $region13: #{tpu_custom_call.1} parent=1 // pred_fallthru
      _
    // Predicated region
    $region14: #{tpu_custom_call.1} parent=1 // pred_check
      _
    $region15: #{tpu_custom_call.1} parent=1 // pred_check_branch
      %29 = sbr.rel (0) target = $region17
    $region16: #{tpu_custom_call.1} parent=1 // pred_region
      _
    $region17: #{tpu_custom_call.1} parent=1 // pred_fallthru
      _
    // Predicated region
    $region18: #{tpu_custom_call.1} parent=1 // pred_check
      _
    $region19: #{tpu_custom_call.1} parent=1 // pred_check_branch
      %31 = sbr.rel (0) target = $region21
    $region20: #{tpu_custom_call.1} parent=1 // pred_region
      _
    $region21: #{tpu_custom_call.1} parent=1 // pred_fallthru
      _
    // Predicated region
    $region22: #{tpu_custom_call.1} parent=1 // pred_check
      _
    $region23: #{tpu_custom_call.1} parent=1 // pred_check_branch
      %33 = sbr.rel (0) target = $region25
    $region24: #{tpu_custom_call.1} parent=1 // pred_region
      _
    $region25: #{tpu_custom_call.1} parent=1 // pred_fallthru
      _
    // Predicated region
    $region26: #{tpu_custom_call.1} parent=1 // pred_check
      _
    $region27: #{tpu_custom_call.1} parent=1 // pred_check_branch
      %35 = sbr.rel (0) target = $region29
    $region28: #{tpu_custom_call.1} parent=1 // pred_region
      _
    $region29: #{tpu_custom_call.1} parent=1 // pred_fallthru
      _
    // Predicated region
    $region30: #{tpu_custom_call.1} parent=1 // pred_check
      _
    $region31: #{tpu_custom_call.1} parent=1 // pred_check_branch
      %37 = sbr.rel (0) target = $region33
    $region32: #{tpu_custom_call.1} parent=1 // pred_region
      _
    $region33: #{tpu_custom_call.1} parent=1 // pred_fallthru
      _
    // Predicated region
    $region34: #{tpu_custom_call.1} parent=1 // pred_check
      _
    $region35: #{tpu_custom_call.1} parent=1 // pred_check_branch
      %39 = sbr.rel (0) target = $region37
    $region36: #{tpu_custom_call.1} parent=1 // pred_region
      _
    $region37: #{tpu_custom_call.1} parent=1 // pred_fallthru
      _
    // Predicated region
    $region38: #{tpu_custom_call.1} parent=1 // pred_check
      _
    $region39: #{tpu_custom_call.1} parent=1 // pred_check_branch
      %41 = sbr.rel (0) target = $region41
    $region40: #{tpu_custom_call.1} parent=1 // pred_region
      _
    $region41: #{tpu_custom_call.1} parent=1 // pred_fallthru
      _
    // Predicated region
    $region42: #{tpu_custom_call.1} parent=1 // pred_check
      _
    $region43: #{tpu_custom_call.1} parent=1 // pred_check_branch
      %43 = sbr.rel (0) target = $region45
    $region44: #{tpu_custom_call.1} parent=1 // pred_region
      _
    $region45: #{tpu_custom_call.1} parent=1 // pred_fallthru
      _
    // Predicated region
    $region46: #{tpu_custom_call.1} parent=1 // pred_check
      _
    $region47: #{tpu_custom_call.1} parent=1 // pred_check_branch
      %45 = sbr.rel (0) target = $region49
    $region48: #{tpu_custom_call.1} parent=1 // pred_region
      _
    $region49: #{tpu_custom_call.1} parent=1 // pred_fallthru
      _
    // Predicated region
    $region50: #{tpu_custom_call.1} parent=1 // pred_check
      _
    $region51: #{tpu_custom_call.1} parent=1 // pred_check_branch
      %47 = sbr.rel (0) target = $region53
    $region52: #{tpu_custom_call.1} parent=1 // pred_region
      _
    $region53: #{tpu_custom_call.1} parent=1 // pred_fallthru
      _
    // Predicated region
    $region54: #{tpu_custom_call.1} parent=1 // pred_check
      _
    $region55: #{tpu_custom_call.1} parent=1 // pred_check_branch
      %49 = sbr.rel (0) target = $region57
    $region56: #{tpu_custom_call.1} parent=1 // pred_region
      _
    $region57: #{tpu_custom_call.1} parent=1 // pred_fallthru
      _
    %v50 = vld [vmem:[%s0] sm:$0xff]
    %v51 = vld [vmem:[%s0 + $0x8] sm:$0xff]
    %v52 = vld [vmem:[%s0 + $0x10] sm:$0xff]
    %v53 = vld [vmem:[%s0 + $0x18] sm:$0xff]
    %v54 = vld [vmem:[%s1] sm:$0xff]
    %v55 = vld [vmem:[%s2] sm:$0xff]
    %v56 = vld [vmem:[%s2 + $0x8] sm:$0xff]
    %v57 = vld [vmem:[%s2 + $0x10] sm:$0xff]
    %v58 = vld [vmem:[%s2 + $0x18] sm:$0xff]
    %v59 = vld [vmem:[%s2 + $0x20] sm:$0xff]
    %v60 = vld [vmem:[%s2 + $0x28] sm:$0xff]
    %v61 = vld [vmem:[%s2 + $0x30] sm:$0xff]
    %v62 = vld [vmem:[%s2 + $0x38] sm:$0xff]
    %v63 = vld [vmem:[%s2 + $0x40] sm:$0xff]
    %v64 = vld [vmem:[%s2 + $0x48] sm:$0xff]
    %v65 = vld [vmem:[%s2 + $0x50] sm:$0xff]
    %v66 = vld [vmem:[%s2 + $0x58] sm:$0xff]
    %v67 = vld [vmem:[%s2 + $0x60] sm:$0xff]
    %v68 = vld [vmem:[%s2 + $0x68] sm:$0xff]
    %v69 = vld [vmem:[%s2 + $0x70] sm:$0xff]
    %v70 = vld [vmem:[%s2 + $0x78] sm:$0xff]
    %v71 = vld [vmem:[%s2 + $0x80] sm:$0xff]
    %v72 = vld [vmem:[%s2 + $0x88] sm:$0xff]
    %v73 = vld [vmem:[%s2 + $0x90] sm:$0xff]
    %v74 = vld [vmem:[%s2 + $0x98] sm:$0xff]
    %v75 = vld [vmem:[%s2 + $0xa0] sm:$0xff]
    %v76 = vld [vmem:[%s2 + $0xa8] sm:$0xff]
    %v77 = vld [vmem:[%s2 + $0xb0] sm:$0xff]
    %v78 = vld [vmem:[%s2 + $0xb8] sm:$0xff]
    %v79 = vld [vmem:[%s2 + $0xc0] sm:$0xff]
    %v80 = vld [vmem:[%s2 + $0xc8] sm:$0xff]
    %v81 = vld [vmem:[%s2 + $0xd0] sm:$0xff]
    %v82 = vld [vmem:[%s2 + $0xd8] sm:$0xff]
    %v83 = vld [vmem:[%s2 + $0xe0] sm:$0xff]
    %v84 = vld [vmem:[%s2 + $0xe8] sm:$0xff]
    %v85 = vld [vmem:[%s2 + $0xf0] sm:$0xff]
    %v86 = vld [vmem:[%s2 + $0xf8] sm:$0xff]
    %v87 = vld [vmem:[%s3] sm:$0xff]
    %v88 = vld [vmem:[%s3 + $0x8] sm:$0xff]
    %v89 = vld [vmem:[%s3 + $0x10] sm:$0xff]
    %v90 = vld [vmem:[%s3 + $0x18] sm:$0xff]
    %v91 = vld [vmem:[%s3 + $0x20] sm:$0xff]
    %v92 = vld [vmem:[%s3 + $0x28] sm:$0xff]
    %v93 = vld [vmem:[%s3 + $0x30] sm:$0xff]
    %v94 = vld [vmem:[%s3 + $0x38] sm:$0xff]
    %v95 = vld [vmem:[%s3 + $0x40] sm:$0xff]
    %v96 = vld [vmem:[%s3 + $0x48] sm:$0xff]
    %v97 = vld [vmem:[%s3 + $0x50] sm:$0xff]
    %v98 = vld [vmem:[%s3 + $0x58] sm:$0xff]
    %v99 = vld [vmem:[%s3 + $0x60] sm:$0xff]
    %v100 = vld [vmem:[%s3 + $0x68] sm:$0xff]
    %v101 = vld [vmem:[%s3 + $0x70] sm:$0xff]
    %v102 = vld [vmem:[%s3 + $0x78] sm:$0xff]
    %v103 = vld [vmem:[%s3 + $0x80] sm:$0xff]
    %v104 = vld [vmem:[%s3 + $0x88] sm:$0xff]
    %v105 = vld [vmem:[%s3 + $0x90] sm:$0xff]
    %v106 = vld [vmem:[%s3 + $0x98] sm:$0xff]
    %v107 = vld [vmem:[%s3 + $0xa0] sm:$0xff]
    %v108 = vld [vmem:[%s3 + $0xa8] sm:$0xff]
    %v109 = vld [vmem:[%s3 + $0xb0] sm:$0xff]
    %v110 = vld [vmem:[%s3 + $0xb8] sm:$0xff]
    %v111 = vld [vmem:[%s3 + $0xc0] sm:$0xff]
    %v112 = vld [vmem:[%s3 + $0xc8] sm:$0xff]
    %v113 = vld [vmem:[%s3 + $0xd0] sm:$0xff]
    %v114 = vld [vmem:[%s3 + $0xd8] sm:$0xff]
    %v115 = vld [vmem:[%s3 + $0xe0] sm:$0xff]
    %v116 = vld [vmem:[%s3 + $0xe8] sm:$0xff]
    %v117 = vld [vmem:[%s3 + $0xf0] sm:$0xff]
    %v118 = vld [vmem:[%s3 + $0xf8] sm:$0xff]
    %120 = vset.pattern.permute.xlu0 0
    %121 = vperm.xlu0 %120, %v87
    %v122 = vpop.permute.xlu0 %121
    %125 = vset.pattern.permute.xlu0 0
    %126 = vperm.xlu0 %125, %v88
    %v127 = vpop.permute.xlu0 %126
    %130 = vset.pattern.permute.xlu0 0
    %131 = vperm.xlu0 %130, %v89
    %v132 = vpop.permute.xlu0 %131
    %135 = vset.pattern.permute.xlu0 0
    %136 = vperm.xlu0 %135, %v90
    %v137 = vpop.permute.xlu0 %136
    %140 = vset.pattern.permute.xlu0 0
    %141 = vperm.xlu0 %140, %v91
    %v142 = vpop.permute.xlu0 %141
    %145 = vset.pattern.permute.xlu0 0
    %146 = vperm.xlu0 %145, %v92
    %v147 = vpop.permute.xlu0 %146
    %150 = vset.pattern.permute.xlu0 0
    %151 = vperm.xlu0 %150, %v93
    %v152 = vpop.permute.xlu0 %151
    %155 = vset.pattern.permute.xlu0 0
    %156 = vperm.xlu0 %155, %v94
    %v157 = vpop.permute.xlu0 %156
    %160 = vset.pattern.permute.xlu0 0
    %161 = vperm.xlu0 %160, %v95
    %v162 = vpop.permute.xlu0 %161
    %165 = vset.pattern.permute.xlu0 0
    %166 = vperm.xlu0 %165, %v96
    %v167 = vpop.permute.xlu0 %166
    %170 = vset.pattern.permute.xlu0 0
    %171 = vperm.xlu0 %170, %v97
    %v172 = vpop.permute.xlu0 %171
    %175 = vset.pattern.permute.xlu0 0
    %176 = vperm.xlu0 %175, %v98
    %v177 = vpop.permute.xlu0 %176
    %180 = vset.pattern.permute.xlu0 0
    %181 = vperm.xlu0 %180, %v99
    %v182 = vpop.permute.xlu0 %181
    %185 = vset.pattern.permute.xlu0 0
    %186 = vperm.xlu0 %185, %v100
    %v187 = vpop.permute.xlu0 %186
    %190 = vset.pattern.permute.xlu0 0
    %191 = vperm.xlu0 %190, %v101
    %v192 = vpop.permute.xlu0 %191
    %195 = vset.pattern.permute.xlu0 0
    %196 = vperm.xlu0 %195, %v102
    %v197 = vpop.permute.xlu0 %196
    %200 = vset.pattern.permute.xlu0 0
    %201 = vperm.xlu0 %200, %v103
    %v202 = vpop.permute.xlu0 %201
    %205 = vset.pattern.permute.xlu0 0
    %206 = vperm.xlu0 %205, %v104
    %v207 = vpop.permute.xlu0 %206
    %210 = vset.pattern.permute.xlu0 0
    %211 = vperm.xlu0 %210, %v105
    %v212 = vpop.permute.xlu0 %211
    %215 = vset.pattern.permute.xlu0 0
    %216 = vperm.xlu0 %215, %v106
    %v217 = vpop.permute.xlu0 %216
    %220 = vset.pattern.permute.xlu0 0
    %221 = vperm.xlu0 %220, %v107
    %v222 = vpop.permute.xlu0 %221
    %225 = vset.pattern.permute.xlu0 0
    %226 = vperm.xlu0 %225, %v108
    %v227 = vpop.permute.xlu0 %226
    %230 = vset.pattern.permute.xlu0 0
    %231 = vperm.xlu0 %230, %v109
    %v232 = vpop.permute.xlu0 %231
    %235 = vset.pattern.permute.xlu0 0
    %236 = vperm.xlu0 %235, %v110
    %v237 = vpop.permute.xlu0 %236
    %240 = vset.pattern.permute.xlu0 0
    %241 = vperm.xlu0 %240, %v111
    %v242 = vpop.permute.xlu0 %241
    %245 = vset.pattern.permute.xlu0 0
    %246 = vperm.xlu0 %245, %v112
    %v247 = vpop.permute.xlu0 %246
    %250 = vset.pattern.permute.xlu0 0
    %251 = vperm.xlu0 %250, %v113
    %v252 = vpop.permute.xlu0 %251
    %255 = vset.pattern.permute.xlu0 0
    %256 = vperm.xlu0 %255, %v114
    %v257 = vpop.permute.xlu0 %256
    %260 = vset.pattern.permute.xlu0 0
    %261 = vperm.xlu0 %260, %v115
    %v262 = vpop.permute.xlu0 %261
    %265 = vset.pattern.permute.xlu0 0
    %266 = vperm.xlu0 %265, %v116
    %v267 = vpop.permute.xlu0 %266
    %270 = vset.pattern.permute.xlu0 0
    %271 = vperm.xlu0 %270, %v117
    %v272 = vpop.permute.xlu0 %271
    %275 = vset.pattern.permute.xlu0 0
    %276 = vperm.xlu0 %275, %v118
    %v277 = vpop.permute.xlu0 %276
    %vm279 = vcmask 130048
    %v281 = vsel %vm279, %v55, 0
    %v284 = vsel %vm279, %v56, 0
    %v287 = vsel %vm279, %v57, 0
    %v290 = vsel %vm279, %v58, 0
    %v293 = vsel %vm279, %v59, 0
    %v296 = vsel %vm279, %v60, 0
    %v299 = vsel %vm279, %v61, 0
    %v302 = vsel %vm279, %v62, 0
    %v305 = vsel %vm279, %v63, 0
    %v308 = vsel %vm279, %v64, 0
    %v311 = vsel %vm279, %v65, 0
    %v314 = vsel %vm279, %v66, 0
    %v317 = vsel %vm279, %v67, 0
    %v320 = vsel %vm279, %v68, 0
    %v323 = vsel %vm279, %v69, 0
    %v326 = vsel %vm279, %v70, 0
    %v329 = vsel %vm279, %v71, 0
    %v332 = vsel %vm279, %v72, 0
    %v335 = vsel %vm279, %v73, 0
    %v338 = vsel %vm279, %v74, 0
    %v341 = vsel %vm279, %v75, 0
    %v344 = vsel %vm279, %v76, 0
    %v347 = vsel %vm279, %v77, 0
    %v350 = vsel %vm279, %v78, 0
    %v353 = vsel %vm279, %v79, 0
    %v356 = vsel %vm279, %v80, 0
    %v359 = vsel %vm279, %v81, 0
    %v362 = vsel %vm279, %v82, 0
    %v365 = vsel %vm279, %v83, 0
    %v368 = vsel %vm279, %v84, 0
    %v371 = vsel %vm279, %v85, 0
    %v374 = vsel %vm279, %v86, 0
    %376 = vmatprep.subr.mxu0 0.0
    %377 = vmatpush1.msra.mxu0 0.0
    %378 = vmatprep.subr.mxu0 0.0
    %379 = vmatpush1.msra.mxu0 0.0
    %380 = vmatprep.subr.mxu0 0.0
    %381 = vmatpush1.msra.mxu0 0.0
    %382 = vmatprep.subr.mxu0 0.0
    %383 = vmatpush1.msra.mxu0 0.0
    %384 = vmatprep.subr.mxu0 0.0
    %385 = vmatpush1.msra.mxu0 0.0
    %386 = vmatprep.subr.mxu0 0.0
    %387 = vmatpush1.msra.mxu0 0.0
    %388 = vmatprep.subr.mxu0 0.0
    %389 = vmatpush1.msra.mxu0 0.0
    %390 = vmatprep.subr.mxu0 0.0
    %391 = vmatpush1.msra.mxu0 0.0
    %392 = vmatprep.subr.mxu0 0.0
    %393 = vmatpush1.msra.mxu0 0.0
    %394 = vmatprep.subr.mxu0 0.0
    %395 = vmatpush1.msra.mxu0 0.0
    %396 = vmatprep.subr.mxu0 0.0
    %397 = vmatpush1.msra.mxu0 0.0
    %398 = vmatprep.subr.mxu0 0.0
    %399 = vmatpush1.msra.mxu0 0.0
    %400 = vmatprep.subr.mxu0 0.0
    %401 = vmatpush1.msra.mxu0 0.0
    %402 = vmatprep.subr.mxu0 0.0
    %403 = vmatpush1.msra.mxu0 0.0
    %404 = vmatprep.subr.mxu0 %v53
    %405 = vmatpush1.msra.mxu0 %v52
    %406 = vmatprep.subr.mxu0 %v51
    %407 = vmatpush1.msra.mxu0 %v50
    %408 = vmatprep.subr.mxu0 0.0
    %409 = vmatpush2.msra.mxu0 0.0
    %410 = vmatprep.subr.mxu0 0.0
    %411 = vmatpush2.msra.mxu0 0.0
    %412 = vmatprep.subr.mxu0 0.0
    %413 = vmatpush2.msra.mxu0 0.0
    %414 = vmatprep.subr.mxu0 0.0
    %415 = vmatpush2.msra.mxu0 0.0
    %416 = vmatprep.subr.mxu0 0.0
    %417 = vmatpush2.msra.mxu0 0.0
    %418 = vmatprep.subr.mxu0 0.0
    %419 = vmatpush2.msra.mxu0 0.0
    %420 = vmatprep.subr.mxu0 0.0
    %421 = vmatpush2.msra.mxu0 0.0
    %422 = vmatprep.subr.mxu0 0.0
    %423 = vmatpush2.msra.mxu0 0.0
    %424 = vmatprep.subr.mxu0 0.0
    %425 = vmatpush2.msra.mxu0 0.0
    %426 = vmatprep.subr.mxu0 0.0
    %427 = vmatpush2.msra.mxu0 0.0
    %428 = vmatprep.subr.mxu0 0.0
    %429 = vmatpush2.msra.mxu0 0.0
    %430 = vmatprep.subr.mxu0 0.0
    %431 = vmatpush2.msra.mxu0 0.0
    %432 = vmatprep.subr.mxu0 0.0
    %433 = vmatpush2.msra.mxu0 0.0
    %434 = vmatprep.subr.mxu0 0.0
    %435 = vmatpush2.msra.mxu0 0.0
    %436 = vmatprep.subr.mxu0 0.0
    %437 = vmatpush2.msra.mxu0 0.0
    %438 = vmatprep.subr.mxu0 0.0
    %439 = vmatpush2.msra.mxu0 0.0
    %440 = vmatprep.mubr.f32.mxu0 0.0
    %441 = vmatmul.mubr.f32.gmra.mxu0 %v281
    %v442 = vpop.f32.mrf.mxu0
    %v443 = vadd.f32 %v122, %v442
    %v444 = vpop.f32.mrf.mxu0
    %v445 = vadd.f32 %v122, %v444
    %446 = vmatprep.mubr.f32.mxu0 0.0
    %447 = vmatmul.mubr.f32.gmra.mxu0 %v284
    %v448 = vpop.f32.mrf.mxu0
    %v449 = vadd.f32 %v127, %v448
    %v450 = vpop.f32.mrf.mxu0
    %v451 = vadd.f32 %v127, %v450
    %452 = vmatprep.mubr.f32.mxu0 0.0
    %453 = vmatmul.mubr.f32.gmra.mxu0 %v287
    %v454 = vpop.f32.mrf.mxu0
    %v455 = vadd.f32 %v132, %v454
    %v456 = vpop.f32.mrf.mxu0
    %v457 = vadd.f32 %v132, %v456
    %458 = vmatprep.mubr.f32.mxu0 0.0
    %459 = vmatmul.mubr.f32.gmra.mxu0 %v290
    %v460 = vpop.f32.mrf.mxu0
    %v461 = vadd.f32 %v137, %v460
    %v462 = vpop.f32.mrf.mxu0
    %v463 = vadd.f32 %v137, %v462
    %464 = vmatprep.mubr.f32.mxu0 0.0
    %465 = vmatmul.mubr.f32.gmra.mxu0 %v293
    %v466 = vpop.f32.mrf.mxu0
    %v467 = vadd.f32 %v142, %v466
    %v468 = vpop.f32.mrf.mxu0
    %v469 = vadd.f32 %v142, %v468
    %470 = vmatprep.mubr.f32.mxu0 0.0
    %471 = vmatmul.mubr.f32.gmra.mxu0 %v296
    %v472 = vpop.f32.mrf.mxu0
    %v473 = vadd.f32 %v147, %v472
    %v474 = vpop.f32.mrf.mxu0
    %v475 = vadd.f32 %v147, %v474
    %476 = vmatprep.mubr.f32.mxu0 0.0
    %477 = vmatmul.mubr.f32.gmra.mxu0 %v299
    %v478 = vpop.f32.mrf.mxu0
    %v479 = vadd.f32 %v152, %v478
    %v480 = vpop.f32.mrf.mxu0
    %v481 = vadd.f32 %v152, %v480
    %482 = vmatprep.mubr.f32.mxu0 0.0
    %483 = vmatmul.mubr.f32.gmra.mxu0 %v302
    %v484 = vpop.f32.mrf.mxu0
    %v485 = vadd.f32 %v157, %v484
    %v486 = vpop.f32.mrf.mxu0
    %v487 = vadd.f32 %v157, %v486
    %488 = vmatprep.mubr.f32.mxu0 0.0
    %489 = vmatmul.mubr.f32.gmra.mxu0 %v305
    %v490 = vpop.f32.mrf.mxu0
    %v491 = vadd.f32 %v162, %v490
    %v492 = vpop.f32.mrf.mxu0
    %v493 = vadd.f32 %v162, %v492
    %494 = vmatprep.mubr.f32.mxu0 0.0
    %495 = vmatmul.mubr.f32.gmra.mxu0 %v308
    %v496 = vpop.f32.mrf.mxu0
    %v497 = vadd.f32 %v167, %v496
    %v498 = vpop.f32.mrf.mxu0
    %v499 = vadd.f32 %v167, %v498
    %500 = vmatprep.mubr.f32.mxu0 0.0
    %501 = vmatmul.mubr.f32.gmra.mxu0 %v311
    %v502 = vpop.f32.mrf.mxu0
    %v503 = vadd.f32 %v172, %v502
    %v504 = vpop.f32.mrf.mxu0
    %v505 = vadd.f32 %v172, %v504
    %506 = vmatprep.mubr.f32.mxu0 0.0
    %507 = vmatmul.mubr.f32.gmra.mxu0 %v314
    %v508 = vpop.f32.mrf.mxu0
    %v509 = vadd.f32 %v177, %v508
    %v510 = vpop.f32.mrf.mxu0
    %v511 = vadd.f32 %v177, %v510
    %512 = vmatprep.mubr.f32.mxu0 0.0
    %513 = vmatmul.mubr.f32.gmra.mxu0 %v317
    %v514 = vpop.f32.mrf.mxu0
    %v515 = vadd.f32 %v182, %v514
    %v516 = vpop.f32.mrf.mxu0
    %v517 = vadd.f32 %v182, %v516
    %518 = vmatprep.mubr.f32.mxu0 0.0
    %519 = vmatmul.mubr.f32.gmra.mxu0 %v320
    %v520 = vpop.f32.mrf.mxu0
    %v521 = vadd.f32 %v187, %v520
    %v522 = vpop.f32.mrf.mxu0
    %v523 = vadd.f32 %v187, %v522
    %524 = vmatprep.mubr.f32.mxu0 0.0
    %525 = vmatmul.mubr.f32.gmra.mxu0 %v323
    %v526 = vpop.f32.mrf.mxu0
    %v527 = vadd.f32 %v192, %v526
    %v528 = vpop.f32.mrf.mxu0
    %v529 = vadd.f32 %v192, %v528
    %530 = vmatprep.mubr.f32.mxu0 0.0
    %531 = vmatmul.mubr.f32.gmra.mxu0 %v326
    %v532 = vpop.f32.mrf.mxu0
    %v533 = vadd.f32 %v197, %v532
    %v534 = vpop.f32.mrf.mxu0
    %v535 = vadd.f32 %v197, %v534
    %536 = vmatprep.mubr.f32.mxu0 0.0
    %537 = vmatmul.mubr.f32.gmra.mxu0 %v329
    %v538 = vpop.f32.mrf.mxu0
    %v539 = vadd.f32 %v202, %v538
    %v540 = vpop.f32.mrf.mxu0
    %v541 = vadd.f32 %v202, %v540
    %542 = vmatprep.mubr.f32.mxu0 0.0
    %543 = vmatmul.mubr.f32.gmra.mxu0 %v332
    %v544 = vpop.f32.mrf.mxu0
    %v545 = vadd.f32 %v207, %v544
    %v546 = vpop.f32.mrf.mxu0
    %v547 = vadd.f32 %v207, %v546
    %548 = vmatprep.mubr.f32.mxu0 0.0
    %549 = vmatmul.mubr.f32.gmra.mxu0 %v335
    %v550 = vpop.f32.mrf.mxu0
    %v551 = vadd.f32 %v212, %v550
    %v552 = vpop.f32.mrf.mxu0
    %v553 = vadd.f32 %v212, %v552
    %554 = vmatprep.mubr.f32.mxu0 0.0
    %555 = vmatmul.mubr.f32.gmra.mxu0 %v338
    %v556 = vpop.f32.mrf.mxu0
    %v557 = vadd.f32 %v217, %v556
    %v558 = vpop.f32.mrf.mxu0
    %v559 = vadd.f32 %v217, %v558
    %560 = vmatprep.mubr.f32.mxu0 0.0
    %561 = vmatmul.mubr.f32.gmra.mxu0 %v341
    %v562 = vpop.f32.mrf.mxu0
    %v563 = vadd.f32 %v222, %v562
    %v564 = vpop.f32.mrf.mxu0
    %v565 = vadd.f32 %v222, %v564
    %566 = vmatprep.mubr.f32.mxu0 0.0
    %567 = vmatmul.mubr.f32.gmra.mxu0 %v344
    %v568 = vpop.f32.mrf.mxu0
    %v569 = vadd.f32 %v227, %v568
    %v570 = vpop.f32.mrf.mxu0
    %v571 = vadd.f32 %v227, %v570
    %572 = vmatprep.mubr.f32.mxu0 0.0
    %573 = vmatmul.mubr.f32.gmra.mxu0 %v347
    %v574 = vpop.f32.mrf.mxu0
    %v575 = vadd.f32 %v232, %v574
    %v576 = vpop.f32.mrf.mxu0
    %v577 = vadd.f32 %v232, %v576
    %578 = vmatprep.mubr.f32.mxu0 0.0
    %579 = vmatmul.mubr.f32.gmra.mxu0 %v350
    %v580 = vpop.f32.mrf.mxu0
    %v581 = vadd.f32 %v237, %v580
    %v582 = vpop.f32.mrf.mxu0
    %v583 = vadd.f32 %v237, %v582
    %584 = vmatprep.mubr.f32.mxu0 0.0
    %585 = vmatmul.mubr.f32.gmra.mxu0 %v353
    %v586 = vpop.f32.mrf.mxu0
    %v587 = vadd.f32 %v242, %v586
    %v588 = vpop.f32.mrf.mxu0
    %v589 = vadd.f32 %v242, %v588
    %590 = vmatprep.mubr.f32.mxu0 0.0
    %591 = vmatmul.mubr.f32.gmra.mxu0 %v356
    %v592 = vpop.f32.mrf.mxu0
    %v593 = vadd.f32 %v247, %v592
    %v594 = vpop.f32.mrf.mxu0
    %v595 = vadd.f32 %v247, %v594
    %596 = vmatprep.mubr.f32.mxu0 0.0
    %597 = vmatmul.mubr.f32.gmra.mxu0 %v359
    %v598 = vpop.f32.mrf.mxu0
    %v599 = vadd.f32 %v252, %v598
    %v600 = vpop.f32.mrf.mxu0
    %v601 = vadd.f32 %v252, %v600
    %602 = vmatprep.mubr.f32.mxu0 0.0
    %603 = vmatmul.mubr.f32.gmra.mxu0 %v362
    %v604 = vpop.f32.mrf.mxu0
    %v605 = vadd.f32 %v257, %v604
    %v606 = vpop.f32.mrf.mxu0
    %v607 = vadd.f32 %v257, %v606
    %608 = vmatprep.mubr.f32.mxu0 0.0
    %609 = vmatmul.mubr.f32.gmra.mxu0 %v365
    %v610 = vpop.f32.mrf.mxu0
    %v611 = vadd.f32 %v262, %v610
    %v612 = vpop.f32.mrf.mxu0
    %v613 = vadd.f32 %v262, %v612
    %614 = vmatprep.mubr.f32.mxu0 0.0
    %615 = vmatmul.mubr.f32.gmra.mxu0 %v368
    %v616 = vpop.f32.mrf.mxu0
    %v617 = vadd.f32 %v267, %v616
    %v618 = vpop.f32.mrf.mxu0
    %v619 = vadd.f32 %v267, %v618
    %620 = vmatprep.mubr.f32.mxu0 0.0
    %621 = vmatmul.mubr.f32.gmra.mxu0 %v371
    %v622 = vpop.f32.mrf.mxu0
    %v623 = vadd.f32 %v272, %v622
    %v624 = vpop.f32.mrf.mxu0
    %v625 = vadd.f32 %v272, %v624
    %626 = vmatprep.mubr.f32.mxu0 0.0
    %627 = vmatmul.mubr.f32.gmra.mxu0 %v374
    %v628 = vpop.f32.mrf.mxu0
    %v629 = vadd.f32 %v277, %v628
    %v630 = vpop.f32.mrf.mxu0
    %v631 = vadd.f32 %v277, %v630
    %632 = vdwg.mxu0
    %vm633 = vcmp.gt.f32.partialorder %v443, 0.0
    %vm634 = vcmp.gt.f32.partialorder %v445, 0.0
    %vm635 = vcmp.gt.f32.partialorder %v449, 0.0
    %vm636 = vcmp.gt.f32.partialorder %v451, 0.0
    %vm637 = vcmp.gt.f32.partialorder %v455, 0.0
    %vm638 = vcmp.gt.f32.partialorder %v457, 0.0
    %vm639 = vcmp.gt.f32.partialorder %v461, 0.0
    %vm640 = vcmp.gt.f32.partialorder %v463, 0.0
    %vm641 = vcmp.gt.f32.partialorder %v467, 0.0
    %vm642 = vcmp.gt.f32.partialorder %v469, 0.0
    %vm643 = vcmp.gt.f32.partialorder %v473, 0.0
    %vm644 = vcmp.gt.f32.partialorder %v475, 0.0
    %vm645 = vcmp.gt.f32.partialorder %v479, 0.0
    %vm646 = vcmp.gt.f32.partialorder %v481, 0.0
    %vm647 = vcmp.gt.f32.partialorder %v485, 0.0
    %vm648 = vcmp.gt.f32.partialorder %v487, 0.0
    %vm649 = vcmp.gt.f32.partialorder %v491, 0.0
    %vm650 = vcmp.gt.f32.partialorder %v493, 0.0
    %vm651 = vcmp.gt.f32.partialorder %v497, 0.0
    %vm652 = vcmp.gt.f32.partialorder %v499, 0.0
    %vm653 = vcmp.gt.f32.partialorder %v503, 0.0
    %vm654 = vcmp.gt.f32.partialorder %v505, 0.0
    %vm655 = vcmp.gt.f32.partialorder %v509, 0.0
    %vm656 = vcmp.gt.f32.partialorder %v511, 0.0
    %vm657 = vcmp.gt.f32.partialorder %v515, 0.0
    %vm658 = vcmp.gt.f32.partialorder %v517, 0.0
    %vm659 = vcmp.gt.f32.partialorder %v521, 0.0
    %vm660 = vcmp.gt.f32.partialorder %v523, 0.0
    %vm661 = vcmp.gt.f32.partialorder %v527, 0.0
    %vm662 = vcmp.gt.f32.partialorder %v529, 0.0
    %vm663 = vcmp.gt.f32.partialorder %v533, 0.0
    %vm664 = vcmp.gt.f32.partialorder %v535, 0.0
    %vm665 = vcmp.gt.f32.partialorder %v539, 0.0
    %vm666 = vcmp.gt.f32.partialorder %v541, 0.0
    %vm667 = vcmp.gt.f32.partialorder %v545, 0.0
    %vm668 = vcmp.gt.f32.partialorder %v547, 0.0
    %vm669 = vcmp.gt.f32.partialorder %v551, 0.0
    %vm670 = vcmp.gt.f32.partialorder %v553, 0.0
    %vm671 = vcmp.gt.f32.partialorder %v557, 0.0
    %vm672 = vcmp.gt.f32.partialorder %v559, 0.0
    %vm673 = vcmp.gt.f32.partialorder %v563, 0.0
    %vm674 = vcmp.gt.f32.partialorder %v565, 0.0
    %vm675 = vcmp.gt.f32.partialorder %v569, 0.0
    %vm676 = vcmp.gt.f32.partialorder %v571, 0.0
    %vm677 = vcmp.gt.f32.partialorder %v575, 0.0
    %vm678 = vcmp.gt.f32.partialorder %v577, 0.0
    %vm679 = vcmp.gt.f32.partialorder %v581, 0.0
    %vm680 = vcmp.gt.f32.partialorder %v583, 0.0
    %vm681 = vcmp.gt.f32.partialorder %v587, 0.0
    %vm682 = vcmp.gt.f32.partialorder %v589, 0.0
    %vm683 = vcmp.gt.f32.partialorder %v593, 0.0
    %vm684 = vcmp.gt.f32.partialorder %v595, 0.0
    %vm685 = vcmp.gt.f32.partialorder %v599, 0.0
    %vm686 = vcmp.gt.f32.partialorder %v601, 0.0
    %vm687 = vcmp.gt.f32.partialorder %v605, 0.0
    %vm688 = vcmp.gt.f32.partialorder %v607, 0.0
    %vm689 = vcmp.gt.f32.partialorder %v611, 0.0
    %vm690 = vcmp.gt.f32.partialorder %v613, 0.0
    %vm691 = vcmp.gt.f32.partialorder %v617, 0.0
    %vm692 = vcmp.gt.f32.partialorder %v619, 0.0
    %vm693 = vcmp.gt.f32.partialorder %v623, 0.0
    %vm694 = vcmp.gt.f32.partialorder %v625, 0.0
    %vm695 = vcmp.gt.f32.partialorder %v629, 0.0
    %vm696 = vcmp.gt.f32.partialorder %v631, 0.0
    %v697 = vmul.f32 %v443, 0.1
    %v698 = vmul.f32 %v445, 0.1
    %v699 = vmul.f32 %v449, 0.1
    %v700 = vmul.f32 %v451, 0.1
    %v701 = vmul.f32 %v455, 0.1
    %v702 = vmul.f32 %v457, 0.1
    %v703 = vmul.f32 %v461, 0.1
    %v704 = vmul.f32 %v463, 0.1
    %v705 = vmul.f32 %v467, 0.1
    %v706 = vmul.f32 %v469, 0.1
    %v707 = vmul.f32 %v473, 0.1
    %v708 = vmul.f32 %v475, 0.1
    %v709 = vmul.f32 %v479, 0.1
    %v710 = vmul.f32 %v481, 0.1
    %v711 = vmul.f32 %v485, 0.1
    %v712 = vmul.f32 %v487, 0.1
    %v713 = vmul.f32 %v491, 0.1
    %v714 = vmul.f32 %v493, 0.1
    %v715 = vmul.f32 %v497, 0.1
    %v716 = vmul.f32 %v499, 0.1
    %v717 = vmul.f32 %v503, 0.1
    %v718 = vmul.f32 %v505, 0.1
    %v719 = vmul.f32 %v509, 0.1
    %v720 = vmul.f32 %v511, 0.1
    %v721 = vmul.f32 %v515, 0.1
    %v722 = vmul.f32 %v517, 0.1
    %v723 = vmul.f32 %v521, 0.1
    %v724 = vmul.f32 %v523, 0.1
    %v725 = vmul.f32 %v527, 0.1
    %v726 = vmul.f32 %v529, 0.1
    %v727 = vmul.f32 %v533, 0.1
    %v728 = vmul.f32 %v535, 0.1
    %v729 = vmul.f32 %v539, 0.1
    %v730 = vmul.f32 %v541, 0.1
    %v731 = vmul.f32 %v545, 0.1
    %v732 = vmul.f32 %v547, 0.1
    %v733 = vmul.f32 %v551, 0.1
    %v734 = vmul.f32 %v553, 0.1
    %v735 = vmul.f32 %v557, 0.1
    %v736 = vmul.f32 %v559, 0.1
    %v737 = vmul.f32 %v563, 0.1
    %v738 = vmul.f32 %v565, 0.1
    %v739 = vmul.f32 %v569, 0.1
    %v740 = vmul.f32 %v571, 0.1
    %v741 = vmul.f32 %v575, 0.1
    %v742 = vmul.f32 %v577, 0.1
    %v743 = vmul.f32 %v581, 0.1
    %v744 = vmul.f32 %v583, 0.1
    %v745 = vmul.f32 %v587, 0.1
    %v746 = vmul.f32 %v589, 0.1
    %v747 = vmul.f32 %v593, 0.1
    %v748 = vmul.f32 %v595, 0.1
    %v749 = vmul.f32 %v599, 0.1
    %v750 = vmul.f32 %v601, 0.1
    %v751 = vmul.f32 %v605, 0.1
    %v752 = vmul.f32 %v607, 0.1
    %v753 = vmul.f32 %v611, 0.1
    %v754 = vmul.f32 %v613, 0.1
    %v755 = vmul.f32 %v617, 0.1
    %v756 = vmul.f32 %v619, 0.1
    %v757 = vmul.f32 %v623, 0.1
    %v758 = vmul.f32 %v625, 0.1
    %v759 = vmul.f32 %v629, 0.1
    %v760 = vmul.f32 %v631, 0.1
    %v761 = vsel %vm633, %v443, %v697
    %v762 = vsel %vm634, %v445, %v698
    %v763 = vsel %vm635, %v449, %v699
    %v764 = vsel %vm636, %v451, %v700
    %v765 = vsel %vm637, %v455, %v701
    %v766 = vsel %vm638, %v457, %v702
    %v767 = vsel %vm639, %v461, %v703
    %v768 = vsel %vm640, %v463, %v704
    %v769 = vsel %vm641, %v467, %v705
    %v770 = vsel %vm642, %v469, %v706
    %v771 = vsel %vm643, %v473, %v707
    %v772 = vsel %vm644, %v475, %v708
    %v773 = vsel %vm645, %v479, %v709
    %v774 = vsel %vm646, %v481, %v710
    %v775 = vsel %vm647, %v485, %v711
    %v776 = vsel %vm648, %v487, %v712
    %v777 = vsel %vm649, %v491, %v713
    %v778 = vsel %vm650, %v493, %v714
    %v779 = vsel %vm651, %v497, %v715
    %v780 = vsel %vm652, %v499, %v716
    %v781 = vsel %vm653, %v503, %v717
    %v782 = vsel %vm654, %v505, %v718
    %v783 = vsel %vm655, %v509, %v719
    %v784 = vsel %vm656, %v511, %v720
    %v785 = vsel %vm657, %v515, %v721
    %v786 = vsel %vm658, %v517, %v722
    %v787 = vsel %vm659, %v521, %v723
    %v788 = vsel %vm660, %v523, %v724
    %v789 = vsel %vm661, %v527, %v725
    %v790 = vsel %vm662, %v529, %v726
    %v791 = vsel %vm663, %v533, %v727
    %v792 = vsel %vm664, %v535, %v728
    %v793 = vsel %vm665, %v539, %v729
    %v794 = vsel %vm666, %v541, %v730
    %v795 = vsel %vm667, %v545, %v731
    %v796 = vsel %vm668, %v547, %v732
    %v797 = vsel %vm669, %v551, %v733
    %v798 = vsel %vm670, %v553, %v734
    %v799 = vsel %vm671, %v557, %v735
    %v800 = vsel %vm672, %v559, %v736
    %v801 = vsel %vm673, %v563, %v737
    %v802 = vsel %vm674, %v565, %v738
    %v803 = vsel %vm675, %v569, %v739
    %v804 = vsel %vm676, %v571, %v740
    %v805 = vsel %vm677, %v575, %v741
    %v806 = vsel %vm678, %v577, %v742
    %v807 = vsel %vm679, %v581, %v743
    %v808 = vsel %vm680, %v583, %v744
    %v809 = vsel %vm681, %v587, %v745
    %v810 = vsel %vm682, %v589, %v746
    %v811 = vsel %vm683, %v593, %v747
    %v812 = vsel %vm684, %v595, %v748
    %v813 = vsel %vm685, %v599, %v749
    %v814 = vsel %vm686, %v601, %v750
    %v815 = vsel %vm687, %v605, %v751
    %v816 = vsel %vm688, %v607, %v752
    %v817 = vsel %vm689, %v611, %v753
    %v818 = vsel %vm690, %v613, %v754
    %v819 = vsel %vm691, %v617, %v755
    %v820 = vsel %vm692, %v619, %v756
    %v821 = vsel %vm693, %v623, %v757
    %v822 = vsel %vm694, %v625, %v758
    %v823 = vsel %vm695, %v629, %v759
    %v824 = vsel %vm696, %v631, %v760
    %v825 = vld [vmem:[%s4] sm:$0xff]
    %v826 = vld [vmem:[%s4 + $0x8] sm:$0xff]
    %v827 = vld [vmem:[%s4 + $0x10] sm:$0xff]
    %v828 = vld [vmem:[%s4 + $0x18] sm:$0xff]
    %v829 = vld [vmem:[%s4 + $0x20] sm:$0xff]
    %v830 = vld [vmem:[%s4 + $0x28] sm:$0xff]
    %v831 = vld [vmem:[%s4 + $0x30] sm:$0xff]
    %v832 = vld [vmem:[%s4 + $0x38] sm:$0xff]
    %v833 = vld [vmem:[%s4 + $0x40] sm:$0xff]
    %v834 = vld [vmem:[%s4 + $0x48] sm:$0xff]
    %v835 = vld [vmem:[%s4 + $0x50] sm:$0xff]
    %v836 = vld [vmem:[%s4 + $0x58] sm:$0xff]
    %v837 = vld [vmem:[%s4 + $0x60] sm:$0xff]
    %v838 = vld [vmem:[%s4 + $0x68] sm:$0xff]
    %v839 = vld [vmem:[%s4 + $0x70] sm:$0xff]
    %v840 = vld [vmem:[%s4 + $0x78] sm:$0xff]
    %v841 = vld [vmem:[%s4 + $0x80] sm:$0xff]
    %v842 = vld [vmem:[%s4 + $0x88] sm:$0xff]
    %v843 = vld [vmem:[%s4 + $0x90] sm:$0xff]
    %v844 = vld [vmem:[%s4 + $0x98] sm:$0xff]
    %v845 = vld [vmem:[%s4 + $0xa0] sm:$0xff]
    %v846 = vld [vmem:[%s4 + $0xa8] sm:$0xff]
    %v847 = vld [vmem:[%s4 + $0xb0] sm:$0xff]
    %v848 = vld [vmem:[%s4 + $0xb8] sm:$0xff]
    %v849 = vld [vmem:[%s4 + $0xc0] sm:$0xff]
    %v850 = vld [vmem:[%s4 + $0xc8] sm:$0xff]
    %v851 = vld [vmem:[%s4 + $0xd0] sm:$0xff]
    %v852 = vld [vmem:[%s4 + $0xd8] sm:$0xff]
    %v853 = vld [vmem:[%s4 + $0xe0] sm:$0xff]
    %v854 = vld [vmem:[%s4 + $0xe8] sm:$0xff]
    %v855 = vld [vmem:[%s4 + $0xf0] sm:$0xff]
    %v856 = vld [vmem:[%s4 + $0xf8] sm:$0xff]
    %v857 = vld [vmem:[%s5] sm:$0xff]
    %v858 = vld [vmem:[%s5 + $0x8] sm:$0xff]
    %v859 = vld [vmem:[%s5 + $0x10] sm:$0xff]
    %v860 = vld [vmem:[%s5 + $0x18] sm:$0xff]
    %v861 = vld [vmem:[%s5 + $0x20] sm:$0xff]
    %v862 = vld [vmem:[%s5 + $0x28] sm:$0xff]
    %v863 = vld [vmem:[%s5 + $0x30] sm:$0xff]
    %v864 = vld [vmem:[%s5 + $0x38] sm:$0xff]
    %v865 = vld [vmem:[%s5 + $0x40] sm:$0xff]
    %v866 = vld [vmem:[%s5 + $0x48] sm:$0xff]
    %v867 = vld [vmem:[%s5 + $0x50] sm:$0xff]
    %v868 = vld [vmem:[%s5 + $0x58] sm:$0xff]
    %v869 = vld [vmem:[%s5 + $0x60] sm:$0xff]
    %v870 = vld [vmem:[%s5 + $0x68] sm:$0xff]
    %v871 = vld [vmem:[%s5 + $0x70] sm:$0xff]
    %v872 = vld [vmem:[%s5 + $0x78] sm:$0xff]
    %874 = vset.pattern.permute.xlu0 0
    %875 = vperm.xlu0 %874, %v857
    %v876 = vpop.permute.xlu0 %875
    %879 = vset.pattern.permute.xlu0 0
    %880 = vperm.xlu0 %879, %v858
    %v881 = vpop.permute.xlu0 %880
    %884 = vset.pattern.permute.xlu0 0
    %885 = vperm.xlu0 %884, %v859
    %v886 = vpop.permute.xlu0 %885
    %889 = vset.pattern.permute.xlu0 0
    %890 = vperm.xlu0 %889, %v860
    %v891 = vpop.permute.xlu0 %890
    %894 = vset.pattern.permute.xlu0 0
    %895 = vperm.xlu0 %894, %v861
    %v896 = vpop.permute.xlu0 %895
    %899 = vset.pattern.permute.xlu0 0
    %900 = vperm.xlu0 %899, %v862
    %v901 = vpop.permute.xlu0 %900
    %904 = vset.pattern.permute.xlu0 0
    %905 = vperm.xlu0 %904, %v863
    %v906 = vpop.permute.xlu0 %905
    %909 = vset.pattern.permute.xlu0 0
    %910 = vperm.xlu0 %909, %v864
    %v911 = vpop.permute.xlu0 %910
    %914 = vset.pattern.permute.xlu0 0
    %915 = vperm.xlu0 %914, %v865
    %v916 = vpop.permute.xlu0 %915
    %919 = vset.pattern.permute.xlu0 0
    %920 = vperm.xlu0 %919, %v866
    %v921 = vpop.permute.xlu0 %920
    %924 = vset.pattern.permute.xlu0 0
    %925 = vperm.xlu0 %924, %v867
    %v926 = vpop.permute.xlu0 %925
    %929 = vset.pattern.permute.xlu0 0
    %930 = vperm.xlu0 %929, %v868
    %v931 = vpop.permute.xlu0 %930
    %934 = vset.pattern.permute.xlu0 0
    %935 = vperm.xlu0 %934, %v869
    %v936 = vpop.permute.xlu0 %935
    %939 = vset.pattern.permute.xlu0 0
    %940 = vperm.xlu0 %939, %v870
    %v941 = vpop.permute.xlu0 %940
    %944 = vset.pattern.permute.xlu0 0
    %945 = vperm.xlu0 %944, %v871
    %v946 = vpop.permute.xlu0 %945
    %949 = vset.pattern.permute.xlu0 0
    %950 = vperm.xlu0 %949, %v872
    %v951 = vpop.permute.xlu0 %950
    %953 = vmatprep.subr.mxu0 %v792
    %954 = vmatpush1.msra.mxu0 %v791
    %955 = vmatprep.subr.mxu0 %v790
    %956 = vmatpush1.msra.mxu0 %v789
    %957 = vmatprep.subr.mxu0 %v788
    %958 = vmatpush1.msra.mxu0 %v787
    %959 = vmatprep.subr.mxu0 %v786
    %960 = vmatpush1.msra.mxu0 %v785
    %961 = vmatprep.subr.mxu0 %v784
    %962 = vmatpush1.msra.mxu0 %v783
    %963 = vmatprep.subr.mxu0 %v782
    %964 = vmatpush1.msra.mxu0 %v781
    %965 = vmatprep.subr.mxu0 %v780
    %966 = vmatpush1.msra.mxu0 %v779
    %967 = vmatprep.subr.mxu0 %v778
    %968 = vmatpush1.msra.mxu0 %v777
    %969 = vmatprep.subr.mxu0 %v776
    %970 = vmatpush1.msra.mxu0 %v775
    %971 = vmatprep.subr.mxu0 %v774
    %972 = vmatpush1.msra.mxu0 %v773
    %973 = vmatprep.subr.mxu0 %v772
    %974 = vmatpush1.msra.mxu0 %v771
    %975 = vmatprep.subr.mxu0 %v770
    %976 = vmatpush1.msra.mxu0 %v769
    %977 = vmatprep.subr.mxu0 %v768
    %978 = vmatpush1.msra.mxu0 %v767
    %979 = vmatprep.subr.mxu0 %v766
    %980 = vmatpush1.msra.mxu0 %v765
    %981 = vmatprep.subr.mxu0 %v764
    %982 = vmatpush1.msra.mxu0 %v763
    %983 = vmatprep.subr.mxu0 %v762
    %984 = vmatpush1.msra.mxu0 %v761
    %985 = vmatprep.subr.mxu0 %v824
    %986 = vmatpush2.msra.mxu0 %v823
    %987 = vmatprep.subr.mxu0 %v822
    %988 = vmatpush2.msra.mxu0 %v821
    %989 = vmatprep.subr.mxu0 %v820
    %990 = vmatpush2.msra.mxu0 %v819
    %991 = vmatprep.subr.mxu0 %v818
    %992 = vmatpush2.msra.mxu0 %v817
    %993 = vmatprep.subr.mxu0 %v816
    %994 = vmatpush2.msra.mxu0 %v815
    %995 = vmatprep.subr.mxu0 %v814
    %996 = vmatpush2.msra.mxu0 %v813
    %997 = vmatprep.subr.mxu0 %v812
    %998 = vmatpush2.msra.mxu0 %v811
    %999 = vmatprep.subr.mxu0 %v810
    %1000 = vmatpush2.msra.mxu0 %v809
    %1001 = vmatprep.subr.mxu0 %v808
    %1002 = vmatpush2.msra.mxu0 %v807
    %1003 = vmatprep.subr.mxu0 %v806
    %1004 = vmatpush2.msra.mxu0 %v805
    %1005 = vmatprep.subr.mxu0 %v804
    %1006 = vmatpush2.msra.mxu0 %v803
    %1007 = vmatprep.subr.mxu0 %v802
    %1008 = vmatpush2.msra.mxu0 %v801
    %1009 = vmatprep.subr.mxu0 %v800
    %1010 = vmatpush2.msra.mxu0 %v799
    %1011 = vmatprep.subr.mxu0 %v798
    %1012 = vmatpush2.msra.mxu0 %v797
    %1013 = vmatprep.subr.mxu0 %v796
    %1014 = vmatpush2.msra.mxu0 %v795
    %1015 = vmatprep.subr.mxu0 %v794
    %1016 = vmatpush2.msra.mxu0 %v793
    %1017 = vmatprep.mubr.f32.mxu0 %v826
    %1018 = vmatmul.mubr.f32.gmra.mxu0 %v825
    %v1019 = vpop.f32.mrf.mxu0
    %v1020 = vadd.f32 %v876, %v1019
    %v1021 = vpop.f32.mrf.mxu0
    %v1022 = vadd.f32 %v876, %v1021
    %1023 = vmatprep.mubr.f32.mxu0 %v828
    %1024 = vmatmul.mubr.f32.gmra.mxu0 %v827
    %v1025 = vpop.f32.mrf.mxu0
    %v1026 = vadd.f32 %v881, %v1025
    %v1027 = vpop.f32.mrf.mxu0
    %v1028 = vadd.f32 %v881, %v1027
    %1029 = vmatprep.mubr.f32.mxu0 %v830
    %1030 = vmatmul.mubr.f32.gmra.mxu0 %v829
    %v1031 = vpop.f32.mrf.mxu0
    %v1032 = vadd.f32 %v886, %v1031
    %v1033 = vpop.f32.mrf.mxu0
    %v1034 = vadd.f32 %v886, %v1033
    %1035 = vmatprep.mubr.f32.mxu0 %v832
    %1036 = vmatmul.mubr.f32.gmra.mxu0 %v831
    %v1037 = vpop.f32.mrf.mxu0
    %v1038 = vadd.f32 %v891, %v1037
    %v1039 = vpop.f32.mrf.mxu0
    %v1040 = vadd.f32 %v891, %v1039
    %1041 = vmatprep.mubr.f32.mxu0 %v834
    %1042 = vmatmul.mubr.f32.gmra.mxu0 %v833
    %v1043 = vpop.f32.mrf.mxu0
    %v1044 = vadd.f32 %v896, %v1043
    %v1045 = vpop.f32.mrf.mxu0
    %v1046 = vadd.f32 %v896, %v1045
    %1047 = vmatprep.mubr.f32.mxu0 %v836
    %1048 = vmatmul.mubr.f32.gmra.mxu0 %v835
    %v1049 = vpop.f32.mrf.mxu0
    %v1050 = vadd.f32 %v901, %v1049
    %v1051 = vpop.f32.mrf.mxu0
    %v1052 = vadd.f32 %v901, %v1051
    %1053 = vmatprep.mubr.f32.mxu0 %v838
    %1054 = vmatmul.mubr.f32.gmra.mxu0 %v837
    %v1055 = vpop.f32.mrf.mxu0
    %v1056 = vadd.f32 %v906, %v1055
    %v1057 = vpop.f32.mrf.mxu0
    %v1058 = vadd.f32 %v906, %v1057
    %1059 = vmatprep.mubr.f32.mxu0 %v840
    %1060 = vmatmul.mubr.f32.gmra.mxu0 %v839
    %v1061 = vpop.f32.mrf.mxu0
    %v1062 = vadd.f32 %v911, %v1061
    %v1063 = vpop.f32.mrf.mxu0
    %v1064 = vadd.f32 %v911, %v1063
    %1065 = vmatprep.mubr.f32.mxu0 %v842
    %1066 = vmatmul.mubr.f32.gmra.mxu0 %v841
    %v1067 = vpop.f32.mrf.mxu0
    %v1068 = vadd.f32 %v916, %v1067
    %v1069 = vpop.f32.mrf.mxu0
    %v1070 = vadd.f32 %v916, %v1069
    %1071 = vmatprep.mubr.f32.mxu0 %v844
    %1072 = vmatmul.mubr.f32.gmra.mxu0 %v843
    %v1073 = vpop.f32.mrf.mxu0
    %v1074 = vadd.f32 %v921, %v1073
    %v1075 = vpop.f32.mrf.mxu0
    %v1076 = vadd.f32 %v921, %v1075
    %1077 = vmatprep.mubr.f32.mxu0 %v846
    %1078 = vmatmul.mubr.f32.gmra.mxu0 %v845
    %v1079 = vpop.f32.mrf.mxu0
    %v1080 = vadd.f32 %v926, %v1079
    %v1081 = vpop.f32.mrf.mxu0
    %v1082 = vadd.f32 %v926, %v1081
    %1083 = vmatprep.mubr.f32.mxu0 %v848
    %1084 = vmatmul.mubr.f32.gmra.mxu0 %v847
    %v1085 = vpop.f32.mrf.mxu0
    %v1086 = vadd.f32 %v931, %v1085
    %v1087 = vpop.f32.mrf.mxu0
    %v1088 = vadd.f32 %v931, %v1087
    %1089 = vmatprep.mubr.f32.mxu0 %v850
    %1090 = vmatmul.mubr.f32.gmra.mxu0 %v849
    %v1091 = vpop.f32.mrf.mxu0
    %v1092 = vadd.f32 %v936, %v1091
    %v1093 = vpop.f32.mrf.mxu0
    %v1094 = vadd.f32 %v936, %v1093
    %1095 = vmatprep.mubr.f32.mxu0 %v852
    %1096 = vmatmul.mubr.f32.gmra.mxu0 %v851
    %v1097 = vpop.f32.mrf.mxu0
    %v1098 = vadd.f32 %v941, %v1097
    %v1099 = vpop.f32.mrf.mxu0
    %v1100 = vadd.f32 %v941, %v1099
    %1101 = vmatprep.mubr.f32.mxu0 %v854
    %1102 = vmatmul.mubr.f32.gmra.mxu0 %v853
    %v1103 = vpop.f32.mrf.mxu0
    %v1104 = vadd.f32 %v946, %v1103
    %v1105 = vpop.f32.mrf.mxu0
    %v1106 = vadd.f32 %v946, %v1105
    %1107 = vmatprep.mubr.f32.mxu0 %v856
    %1108 = vmatmul.mubr.f32.gmra.mxu0 %v855
    %v1109 = vpop.f32.mrf.mxu0
    %v1110 = vadd.f32 %v951, %v1109
    %v1111 = vpop.f32.mrf.mxu0
    %v1112 = vadd.f32 %v951, %v1111
    %1113 = vdwg.mxu0
    %vm1114 = vcmp.gt.f32.partialorder %v1020, 0.0
    %vm1115 = vcmp.gt.f32.partialorder %v1022, 0.0
    %vm1116 = vcmp.gt.f32.partialorder %v1026, 0.0
    %vm1117 = vcmp.gt.f32.partialorder %v1028, 0.0
    %vm1118 = vcmp.gt.f32.partialorder %v1032, 0.0
    %vm1119 = vcmp.gt.f32.partialorder %v1034, 0.0
    %vm1120 = vcmp.gt.f32.partialorder %v1038, 0.0
    %vm1121 = vcmp.gt.f32.partialorder %v1040, 0.0
    %vm1122 = vcmp.gt.f32.partialorder %v1044, 0.0
    %vm1123 = vcmp.gt.f32.partialorder %v1046, 0.0
    %vm1124 = vcmp.gt.f32.partialorder %v1050, 0.0
    %vm1125 = vcmp.gt.f32.partialorder %v1052, 0.0
    %vm1126 = vcmp.gt.f32.partialorder %v1056, 0.0
    %vm1127 = vcmp.gt.f32.partialorder %v1058, 0.0
    %vm1128 = vcmp.gt.f32.partialorder %v1062, 0.0
    %vm1129 = vcmp.gt.f32.partialorder %v1064, 0.0
    %vm1130 = vcmp.gt.f32.partialorder %v1068, 0.0
    %vm1131 = vcmp.gt.f32.partialorder %v1070, 0.0
    %vm1132 = vcmp.gt.f32.partialorder %v1074, 0.0
    %vm1133 = vcmp.gt.f32.partialorder %v1076, 0.0
    %vm1134 = vcmp.gt.f32.partialorder %v1080, 0.0
    %vm1135 = vcmp.gt.f32.partialorder %v1082, 0.0
    %vm1136 = vcmp.gt.f32.partialorder %v1086, 0.0
    %vm1137 = vcmp.gt.f32.partialorder %v1088, 0.0
    %vm1138 = vcmp.gt.f32.partialorder %v1092, 0.0
    %vm1139 = vcmp.gt.f32.partialorder %v1094, 0.0
    %vm1140 = vcmp.gt.f32.partialorder %v1098, 0.0
    %vm1141 = vcmp.gt.f32.partialorder %v1100, 0.0
    %vm1142 = vcmp.gt.f32.partialorder %v1104, 0.0
    %vm1143 = vcmp.gt.f32.partialorder %v1106, 0.0
    %vm1144 = vcmp.gt.f32.partialorder %v1110, 0.0
    %vm1145 = vcmp.gt.f32.partialorder %v1112, 0.0
    %v1146 = vmul.f32 %v1020, 0.1
    %v1147 = vmul.f32 %v1022, 0.1
    %v1148 = vmul.f32 %v1026, 0.1
    %v1149 = vmul.f32 %v1028, 0.1
    %v1150 = vmul.f32 %v1032, 0.1
    %v1151 = vmul.f32 %v1034, 0.1
    %v1152 = vmul.f32 %v1038, 0.1
    %v1153 = vmul.f32 %v1040, 0.1
    %v1154 = vmul.f32 %v1044, 0.1
    %v1155 = vmul.f32 %v1046, 0.1
    %v1156 = vmul.f32 %v1050, 0.1
    %v1157 = vmul.f32 %v1052, 0.1
    %v1158 = vmul.f32 %v1056, 0.1
    %v1159 = vmul.f32 %v1058, 0.1
    %v1160 = vmul.f32 %v1062, 0.1
    %v1161 = vmul.f32 %v1064, 0.1
    %v1162 = vmul.f32 %v1068, 0.1
    %v1163 = vmul.f32 %v1070, 0.1
    %v1164 = vmul.f32 %v1074, 0.1
    %v1165 = vmul.f32 %v1076, 0.1
    %v1166 = vmul.f32 %v1080, 0.1
    %v1167 = vmul.f32 %v1082, 0.1
    %v1168 = vmul.f32 %v1086, 0.1
    %v1169 = vmul.f32 %v1088, 0.1
    %v1170 = vmul.f32 %v1092, 0.1
    %v1171 = vmul.f32 %v1094, 0.1
    %v1172 = vmul.f32 %v1098, 0.1
    %v1173 = vmul.f32 %v1100, 0.1
    %v1174 = vmul.f32 %v1104, 0.1
    %v1175 = vmul.f32 %v1106, 0.1
    %v1176 = vmul.f32 %v1110, 0.1
    %v1177 = vmul.f32 %v1112, 0.1
    %v1178 = vsel %vm1114, %v1020, %v1146
    %v1179 = vsel %vm1115, %v1022, %v1147
    %v1180 = vsel %vm1116, %v1026, %v1148
    %v1181 = vsel %vm1117, %v1028, %v1149
    %v1182 = vsel %vm1118, %v1032, %v1150
    %v1183 = vsel %vm1119, %v1034, %v1151
    %v1184 = vsel %vm1120, %v1038, %v1152
    %v1185 = vsel %vm1121, %v1040, %v1153
    %v1186 = vsel %vm1122, %v1044, %v1154
    %v1187 = vsel %vm1123, %v1046, %v1155
    %v1188 = vsel %vm1124, %v1050, %v1156
    %v1189 = vsel %vm1125, %v1052, %v1157
    %v1190 = vsel %vm1126, %v1056, %v1158
    %v1191 = vsel %vm1127, %v1058, %v1159
    %v1192 = vsel %vm1128, %v1062, %v1160
    %v1193 = vsel %vm1129, %v1064, %v1161
    %v1194 = vsel %vm1130, %v1068, %v1162
    %v1195 = vsel %vm1131, %v1070, %v1163
    %v1196 = vsel %vm1132, %v1074, %v1164
    %v1197 = vsel %vm1133, %v1076, %v1165
    %v1198 = vsel %vm1134, %v1080, %v1166
    %v1199 = vsel %vm1135, %v1082, %v1167
    %v1200 = vsel %vm1136, %v1086, %v1168
    %v1201 = vsel %vm1137, %v1088, %v1169
    %v1202 = vsel %vm1138, %v1092, %v1170
    %v1203 = vsel %vm1139, %v1094, %v1171
    %v1204 = vsel %vm1140, %v1098, %v1172
    %v1205 = vsel %vm1141, %v1100, %v1173
    %v1206 = vsel %vm1142, %v1104, %v1174
    %v1207 = vsel %vm1143, %v1106, %v1175
    %v1208 = vsel %vm1144, %v1110, %v1176
    %v1209 = vsel %vm1145, %v1112, %v1177
    %v1210 = vld [vmem:[%s6] sm:$0xff]
    %v1211 = vld [vmem:[%s6 + $0x8] sm:$0xff]
    %v1212 = vld [vmem:[%s6 + $0x10] sm:$0xff]
    %v1213 = vld [vmem:[%s6 + $0x18] sm:$0xff]
    %v1214 = vld [vmem:[%s6 + $0x20] sm:$0xff]
    %v1215 = vld [vmem:[%s6 + $0x28] sm:$0xff]
    %v1216 = vld [vmem:[%s6 + $0x30] sm:$0xff]
    %v1217 = vld [vmem:[%s6 + $0x38] sm:$0xff]
    %v1218 = vld [vmem:[%s6 + $0x40] sm:$0xff]
    %v1219 = vld [vmem:[%s6 + $0x48] sm:$0xff]
    %v1220 = vld [vmem:[%s6 + $0x50] sm:$0xff]
    %v1221 = vld [vmem:[%s6 + $0x58] sm:$0xff]
    %v1222 = vld [vmem:[%s6 + $0x60] sm:$0xff]
    %v1223 = vld [vmem:[%s6 + $0x68] sm:$0xff]
    %v1224 = vld [vmem:[%s6 + $0x70] sm:$0xff]
    %v1225 = vld [vmem:[%s6 + $0x78] sm:$0xff]
    %v1226 = vld [vmem:[%s7] sm:$0xff]
    %v1227 = vld [vmem:[%s7 + $0x8] sm:$0xff]
    %v1228 = vld [vmem:[%s7 + $0x10] sm:$0xff]
    %v1229 = vld [vmem:[%s7 + $0x18] sm:$0xff]
    %v1230 = vld [vmem:[%s7 + $0x20] sm:$0xff]
    %v1231 = vld [vmem:[%s7 + $0x28] sm:$0xff]
    %v1232 = vld [vmem:[%s7 + $0x30] sm:$0xff]
    %v1233 = vld [vmem:[%s7 + $0x38] sm:$0xff]
    %v1234 = vld [vmem:[%s7 + $0x40] sm:$0xff]
    %v1235 = vld [vmem:[%s7 + $0x48] sm:$0xff]
    %v1236 = vld [vmem:[%s7 + $0x50] sm:$0xff]
    %v1237 = vld [vmem:[%s7 + $0x58] sm:$0xff]
    %v1238 = vld [vmem:[%s7 + $0x60] sm:$0xff]
    %v1239 = vld [vmem:[%s7 + $0x68] sm:$0xff]
    %v1240 = vld [vmem:[%s7 + $0x70] sm:$0xff]
    %v1241 = vld [vmem:[%s7 + $0x78] sm:$0xff]
    %1243 = vset.pattern.permute.xlu0 0
    %1244 = vperm.xlu0 %1243, %v1226
    %v1245 = vpop.permute.xlu0 %1244
    %1248 = vset.pattern.permute.xlu0 0
    %1249 = vperm.xlu0 %1248, %v1227
    %v1250 = vpop.permute.xlu0 %1249
    %1253 = vset.pattern.permute.xlu0 0
    %1254 = vperm.xlu0 %1253, %v1228
    %v1255 = vpop.permute.xlu0 %1254
    %1258 = vset.pattern.permute.xlu0 0
    %1259 = vperm.xlu0 %1258, %v1229
    %v1260 = vpop.permute.xlu0 %1259
    %1263 = vset.pattern.permute.xlu0 0
    %1264 = vperm.xlu0 %1263, %v1230
    %v1265 = vpop.permute.xlu0 %1264
    %1268 = vset.pattern.permute.xlu0 0
    %1269 = vperm.xlu0 %1268, %v1231
    %v1270 = vpop.permute.xlu0 %1269
    %1273 = vset.pattern.permute.xlu0 0
    %1274 = vperm.xlu0 %1273, %v1232
    %v1275 = vpop.permute.xlu0 %1274
    %1278 = vset.pattern.permute.xlu0 0
    %1279 = vperm.xlu0 %1278, %v1233
    %v1280 = vpop.permute.xlu0 %1279
    %1283 = vset.pattern.permute.xlu0 0
    %1284 = vperm.xlu0 %1283, %v1234
    %v1285 = vpop.permute.xlu0 %1284
    %1288 = vset.pattern.permute.xlu0 0
    %1289 = vperm.xlu0 %1288, %v1235
    %v1290 = vpop.permute.xlu0 %1289
    %1293 = vset.pattern.permute.xlu0 0
    %1294 = vperm.xlu0 %1293, %v1236
    %v1295 = vpop.permute.xlu0 %1294
    %1298 = vset.pattern.permute.xlu0 0
    %1299 = vperm.xlu0 %1298, %v1237
    %v1300 = vpop.permute.xlu0 %1299
    %1303 = vset.pattern.permute.xlu0 0
    %1304 = vperm.xlu0 %1303, %v1238
    %v1305 = vpop.permute.xlu0 %1304
    %1308 = vset.pattern.permute.xlu0 0
    %1309 = vperm.xlu0 %1308, %v1239
    %v1310 = vpop.permute.xlu0 %1309
    %1313 = vset.pattern.permute.xlu0 0
    %1314 = vperm.xlu0 %1313, %v1240
    %v1315 = vpop.permute.xlu0 %1314
    %1318 = vset.pattern.permute.xlu0 0
    %1319 = vperm.xlu0 %1318, %v1241
    %v1320 = vpop.permute.xlu0 %1319
    %v1323 = vcombine.high %v54, %v54
    %vm1324 = vcmask 31744
    %v1326 = vsel %vm1324, %v1210, 0
    %v1329 = vsel %vm1324, %v1211, 0
    %v1332 = vsel %vm1324, %v1212, 0
    %v1335 = vsel %vm1324, %v1213, 0
    %v1338 = vsel %vm1324, %v1214, 0
    %v1341 = vsel %vm1324, %v1215, 0
    %v1344 = vsel %vm1324, %v1216, 0
    %v1347 = vsel %vm1324, %v1217, 0
    %v1350 = vsel %vm1324, %v1218, 0
    %v1353 = vsel %vm1324, %v1219, 0
    %v1356 = vsel %vm1324, %v1220, 0
    %v1359 = vsel %vm1324, %v1221, 0
    %v1362 = vsel %vm1324, %v1222, 0
    %v1365 = vsel %vm1324, %v1223, 0
    %v1368 = vsel %vm1324, %v1224, 0
    %v1371 = vsel %vm1324, %v1225, 0
    %vm1373 = vcmask 1043456
    %v1374 = vsel %vm1373, %v54, 0
    %v1376 = vsel %vm1373, %v1323, 0
    %1378 = vmatprep.subr.mxu0 0.0
    %1379 = vmatpush1.msra.mxu0 0.0
    %1380 = vmatprep.subr.mxu0 0.0
    %1381 = vmatpush1.msra.mxu0 0.0
    %1382 = vmatprep.subr.mxu0 0.0
    %1383 = vmatpush1.msra.mxu0 0.0
    %1384 = vmatprep.subr.mxu0 0.0
    %1385 = vmatpush1.msra.mxu0 0.0
    %1386 = vmatprep.subr.mxu0 0.0
    %1387 = vmatpush1.msra.mxu0 0.0
    %1388 = vmatprep.subr.mxu0 0.0
    %1389 = vmatpush1.msra.mxu0 0.0
    %1390 = vmatprep.subr.mxu0 0.0
    %1391 = vmatpush1.msra.mxu0 0.0
    %1392 = vmatprep.subr.mxu0 0.0
    %1393 = vmatpush1.msra.mxu0 0.0
    %1394 = vmatprep.subr.mxu0 0.0
    %1395 = vmatpush1.msra.mxu0 0.0
    %1396 = vmatprep.subr.mxu0 0.0
    %1397 = vmatpush1.msra.mxu0 0.0
    %1398 = vmatprep.subr.mxu0 0.0
    %1399 = vmatpush1.msra.mxu0 0.0
    %1400 = vmatprep.subr.mxu0 0.0
    %1401 = vmatpush1.msra.mxu0 0.0
    %1402 = vmatprep.subr.mxu0 0.0
    %1403 = vmatpush1.msra.mxu0 0.0
    %1404 = vmatprep.subr.mxu0 0.0
    %1405 = vmatpush1.msra.mxu0 0.0
    %1406 = vmatprep.subr.mxu0 0.0
    %1407 = vmatpush1.msra.mxu0 0.0
    %1408 = vmatprep.subr.mxu0 %v1376
    %1409 = vmatpush1.msra.mxu0 %v1374
    %1410 = vmatprep.subr.mxu0 0.0
    %1411 = vmatpush2.msra.mxu0 0.0
    %1412 = vmatprep.subr.mxu0 0.0
    %1413 = vmatpush2.msra.mxu0 0.0
    %1414 = vmatprep.subr.mxu0 0.0
    %1415 = vmatpush2.msra.mxu0 0.0
    %1416 = vmatprep.subr.mxu0 0.0
    %1417 = vmatpush2.msra.mxu0 0.0
    %1418 = vmatprep.subr.mxu0 0.0
    %1419 = vmatpush2.msra.mxu0 0.0
    %1420 = vmatprep.subr.mxu0 0.0
    %1421 = vmatpush2.msra.mxu0 0.0
    %1422 = vmatprep.subr.mxu0 0.0
    %1423 = vmatpush2.msra.mxu0 0.0
    %1424 = vmatprep.subr.mxu0 0.0
    %1425 = vmatpush2.msra.mxu0 0.0
    %1426 = vmatprep.subr.mxu0 0.0
    %1427 = vmatpush2.msra.mxu0 0.0
    %1428 = vmatprep.subr.mxu0 0.0
    %1429 = vmatpush2.msra.mxu0 0.0
    %1430 = vmatprep.subr.mxu0 0.0
    %1431 = vmatpush2.msra.mxu0 0.0
    %1432 = vmatprep.subr.mxu0 0.0
    %1433 = vmatpush2.msra.mxu0 0.0
    %1434 = vmatprep.subr.mxu0 0.0
    %1435 = vmatpush2.msra.mxu0 0.0
    %1436 = vmatprep.subr.mxu0 0.0
    %1437 = vmatpush2.msra.mxu0 0.0
    %1438 = vmatprep.subr.mxu0 0.0
    %1439 = vmatpush2.msra.mxu0 0.0
    %1440 = vmatprep.subr.mxu0 0.0
    %1441 = vmatpush2.msra.mxu0 0.0
    %1442 = vmatprep.mubr.f32.mxu0 0.0
    %1443 = vmatmul.mubr.f32.gmra.mxu0 %v1326
    %v1444 = vpop.f32.mrf.mxu0
    %v1445 = vadd.f32 %v1245, %v1444
    %v1446 = vpop.f32.mrf.mxu0
    %v1447 = vadd.f32 %v1245, %v1446
    %1448 = vmatprep.mubr.f32.mxu0 0.0
    %1449 = vmatmul.mubr.f32.gmra.mxu0 %v1329
    %v1450 = vpop.f32.mrf.mxu0
    %v1451 = vadd.f32 %v1250, %v1450
    %v1452 = vpop.f32.mrf.mxu0
    %v1453 = vadd.f32 %v1250, %v1452
    %1454 = vmatprep.mubr.f32.mxu0 0.0
    %1455 = vmatmul.mubr.f32.gmra.mxu0 %v1332
    %v1456 = vpop.f32.mrf.mxu0
    %v1457 = vadd.f32 %v1255, %v1456
    %v1458 = vpop.f32.mrf.mxu0
    %v1459 = vadd.f32 %v1255, %v1458
    %1460 = vmatprep.mubr.f32.mxu0 0.0
    %1461 = vmatmul.mubr.f32.gmra.mxu0 %v1335
    %v1462 = vpop.f32.mrf.mxu0
    %v1463 = vadd.f32 %v1260, %v1462
    %v1464 = vpop.f32.mrf.mxu0
    %v1465 = vadd.f32 %v1260, %v1464
    %1466 = vmatprep.mubr.f32.mxu0 0.0
    %1467 = vmatmul.mubr.f32.gmra.mxu0 %v1338
    %v1468 = vpop.f32.mrf.mxu0
    %v1469 = vadd.f32 %v1265, %v1468
    %v1470 = vpop.f32.mrf.mxu0
    %v1471 = vadd.f32 %v1265, %v1470
    %1472 = vmatprep.mubr.f32.mxu0 0.0
    %1473 = vmatmul.mubr.f32.gmra.mxu0 %v1341
    %v1474 = vpop.f32.mrf.mxu0
    %v1475 = vadd.f32 %v1270, %v1474
    %v1476 = vpop.f32.mrf.mxu0
    %v1477 = vadd.f32 %v1270, %v1476
    %1478 = vmatprep.mubr.f32.mxu0 0.0
    %1479 = vmatmul.mubr.f32.gmra.mxu0 %v1344
    %v1480 = vpop.f32.mrf.mxu0
    %v1481 = vadd.f32 %v1275, %v1480
    %v1482 = vpop.f32.mrf.mxu0
    %v1483 = vadd.f32 %v1275, %v1482
    %1484 = vmatprep.mubr.f32.mxu0 0.0
    %1485 = vmatmul.mubr.f32.gmra.mxu0 %v1347
    %v1486 = vpop.f32.mrf.mxu0
    %v1487 = vadd.f32 %v1280, %v1486
    %v1488 = vpop.f32.mrf.mxu0
    %v1489 = vadd.f32 %v1280, %v1488
    %1490 = vmatprep.mubr.f32.mxu0 0.0
    %1491 = vmatmul.mubr.f32.gmra.mxu0 %v1350
    %v1492 = vpop.f32.mrf.mxu0
    %v1493 = vadd.f32 %v1285, %v1492
    %v1494 = vpop.f32.mrf.mxu0
    %v1495 = vadd.f32 %v1285, %v1494
    %1496 = vmatprep.mubr.f32.mxu0 0.0
    %1497 = vmatmul.mubr.f32.gmra.mxu0 %v1353
    %v1498 = vpop.f32.mrf.mxu0
    %v1499 = vadd.f32 %v1290, %v1498
    %v1500 = vpop.f32.mrf.mxu0
    %v1501 = vadd.f32 %v1290, %v1500
    %1502 = vmatprep.mubr.f32.mxu0 0.0
    %1503 = vmatmul.mubr.f32.gmra.mxu0 %v1356
    %v1504 = vpop.f32.mrf.mxu0
    %v1505 = vadd.f32 %v1295, %v1504
    %v1506 = vpop.f32.mrf.mxu0
    %v1507 = vadd.f32 %v1295, %v1506
    %1508 = vmatprep.mubr.f32.mxu0 0.0
    %1509 = vmatmul.mubr.f32.gmra.mxu0 %v1359
    %v1510 = vpop.f32.mrf.mxu0
    %v1511 = vadd.f32 %v1300, %v1510
    %v1512 = vpop.f32.mrf.mxu0
    %v1513 = vadd.f32 %v1300, %v1512
    %1514 = vmatprep.mubr.f32.mxu0 0.0
    %1515 = vmatmul.mubr.f32.gmra.mxu0 %v1362
    %v1516 = vpop.f32.mrf.mxu0
    %v1517 = vadd.f32 %v1305, %v1516
    %v1518 = vpop.f32.mrf.mxu0
    %v1519 = vadd.f32 %v1305, %v1518
    %1520 = vmatprep.mubr.f32.mxu0 0.0
    %1521 = vmatmul.mubr.f32.gmra.mxu0 %v1365
    %v1522 = vpop.f32.mrf.mxu0
    %v1523 = vadd.f32 %v1310, %v1522
    %v1524 = vpop.f32.mrf.mxu0
    %v1525 = vadd.f32 %v1310, %v1524
    %1526 = vmatprep.mubr.f32.mxu0 0.0
    %1527 = vmatmul.mubr.f32.gmra.mxu0 %v1368
    %v1528 = vpop.f32.mrf.mxu0
    %v1529 = vadd.f32 %v1315, %v1528
    %v1530 = vpop.f32.mrf.mxu0
    %v1531 = vadd.f32 %v1315, %v1530
    %1532 = vmatprep.mubr.f32.mxu0 0.0
    %1533 = vmatmul.mubr.f32.gmra.mxu0 %v1371
    %v1534 = vpop.f32.mrf.mxu0
    %v1535 = vadd.f32 %v1320, %v1534
    %v1536 = vpop.f32.mrf.mxu0
    %v1537 = vadd.f32 %v1320, %v1536
    %1538 = vdwg.mxu0
    %vm1539 = vcmp.gt.f32.partialorder %v1445, 0.0
    %vm1540 = vcmp.gt.f32.partialorder %v1447, 0.0
    %vm1541 = vcmp.gt.f32.partialorder %v1451, 0.0
    %vm1542 = vcmp.gt.f32.partialorder %v1453, 0.0
    %vm1543 = vcmp.gt.f32.partialorder %v1457, 0.0
    %vm1544 = vcmp.gt.f32.partialorder %v1459, 0.0
    %vm1545 = vcmp.gt.f32.partialorder %v1463, 0.0
    %vm1546 = vcmp.gt.f32.partialorder %v1465, 0.0
    %vm1547 = vcmp.gt.f32.partialorder %v1469, 0.0
    %vm1548 = vcmp.gt.f32.partialorder %v1471, 0.0
    %vm1549 = vcmp.gt.f32.partialorder %v1475, 0.0
    %vm1550 = vcmp.gt.f32.partialorder %v1477, 0.0
    %vm1551 = vcmp.gt.f32.partialorder %v1481, 0.0
    %vm1552 = vcmp.gt.f32.partialorder %v1483, 0.0
    %vm1553 = vcmp.gt.f32.partialorder %v1487, 0.0
    %vm1554 = vcmp.gt.f32.partialorder %v1489, 0.0
    %vm1555 = vcmp.gt.f32.partialorder %v1493, 0.0
    %vm1556 = vcmp.gt.f32.partialorder %v1495, 0.0
    %vm1557 = vcmp.gt.f32.partialorder %v1499, 0.0
    %vm1558 = vcmp.gt.f32.partialorder %v1501, 0.0
    %vm1559 = vcmp.gt.f32.partialorder %v1505, 0.0
    %vm1560 = vcmp.gt.f32.partialorder %v1507, 0.0
    %vm1561 = vcmp.gt.f32.partialorder %v1511, 0.0
    %vm1562 = vcmp.gt.f32.partialorder %v1513, 0.0
    %vm1563 = vcmp.gt.f32.partialorder %v1517, 0.0
    %vm1564 = vcmp.gt.f32.partialorder %v1519, 0.0
    %vm1565 = vcmp.gt.f32.partialorder %v1523, 0.0
    %vm1566 = vcmp.gt.f32.partialorder %v1525, 0.0
    %vm1567 = vcmp.gt.f32.partialorder %v1529, 0.0
    %vm1568 = vcmp.gt.f32.partialorder %v1531, 0.0
    %vm1569 = vcmp.gt.f32.partialorder %v1535, 0.0
    %vm1570 = vcmp.gt.f32.partialorder %v1537, 0.0
    %v1571 = vmul.f32 %v1445, 0.1
    %v1572 = vmul.f32 %v1447, 0.1
    %v1573 = vmul.f32 %v1451, 0.1
    %v1574 = vmul.f32 %v1453, 0.1
    %v1575 = vmul.f32 %v1457, 0.1
    %v1576 = vmul.f32 %v1459, 0.1
    %v1577 = vmul.f32 %v1463, 0.1
    %v1578 = vmul.f32 %v1465, 0.1
    %v1579 = vmul.f32 %v1469, 0.1
    %v1580 = vmul.f32 %v1471, 0.1
    %v1581 = vmul.f32 %v1475, 0.1
    %v1582 = vmul.f32 %v1477, 0.1
    %v1583 = vmul.f32 %v1481, 0.1
    %v1584 = vmul.f32 %v1483, 0.1
    %v1585 = vmul.f32 %v1487, 0.1
    %v1586 = vmul.f32 %v1489, 0.1
    %v1587 = vmul.f32 %v1493, 0.1
    %v1588 = vmul.f32 %v1495, 0.1
    %v1589 = vmul.f32 %v1499, 0.1
    %v1590 = vmul.f32 %v1501, 0.1
    %v1591 = vmul.f32 %v1505, 0.1
    %v1592 = vmul.f32 %v1507, 0.1
    %v1593 = vmul.f32 %v1511, 0.1
    %v1594 = vmul.f32 %v1513, 0.1
    %v1595 = vmul.f32 %v1517, 0.1
    %v1596 = vmul.f32 %v1519, 0.1
    %v1597 = vmul.f32 %v1523, 0.1
    %v1598 = vmul.f32 %v1525, 0.1
    %v1599 = vmul.f32 %v1529, 0.1
    %v1600 = vmul.f32 %v1531, 0.1
    %v1601 = vmul.f32 %v1535, 0.1
    %v1602 = vmul.f32 %v1537, 0.1
    %v1603 = vsel %vm1539, %v1445, %v1571
    %v1604 = vsel %vm1540, %v1447, %v1572
    %v1605 = vsel %vm1541, %v1451, %v1573
    %v1606 = vsel %vm1542, %v1453, %v1574
    %v1607 = vsel %vm1543, %v1457, %v1575
    %v1608 = vsel %vm1544, %v1459, %v1576
    %v1609 = vsel %vm1545, %v1463, %v1577
    %v1610 = vsel %vm1546, %v1465, %v1578
    %v1611 = vsel %vm1547, %v1469, %v1579
    %v1612 = vsel %vm1548, %v1471, %v1580
    %v1613 = vsel %vm1549, %v1475, %v1581
    %v1614 = vsel %vm1550, %v1477, %v1582
    %v1615 = vsel %vm1551, %v1481, %v1583
    %v1616 = vsel %vm1552, %v1483, %v1584
    %v1617 = vsel %vm1553, %v1487, %v1585
    %v1618 = vsel %vm1554, %v1489, %v1586
    %v1619 = vsel %vm1555, %v1493, %v1587
    %v1620 = vsel %vm1556, %v1495, %v1588
    %v1621 = vsel %vm1557, %v1499, %v1589
    %v1622 = vsel %vm1558, %v1501, %v1590
    %v1623 = vsel %vm1559, %v1505, %v1591
    %v1624 = vsel %vm1560, %v1507, %v1592
    %v1625 = vsel %vm1561, %v1511, %v1593
    %v1626 = vsel %vm1562, %v1513, %v1594
    %v1627 = vsel %vm1563, %v1517, %v1595
    %v1628 = vsel %vm1564, %v1519, %v1596
    %v1629 = vsel %vm1565, %v1523, %v1597
    %v1630 = vsel %vm1566, %v1525, %v1598
    %v1631 = vsel %vm1567, %v1529, %v1599
    %v1632 = vsel %vm1568, %v1531, %v1600
    %v1633 = vsel %vm1569, %v1535, %v1601
    %v1634 = vsel %vm1570, %v1537, %v1602
    %v1635 = vld [vmem:[%s8] sm:$0xff]
    %v1636 = vld [vmem:[%s8 + $0x8] sm:$0xff]
    %v1637 = vld [vmem:[%s8 + $0x10] sm:$0xff]
    %v1638 = vld [vmem:[%s8 + $0x18] sm:$0xff]
    %v1639 = vld [vmem:[%s8 + $0x20] sm:$0xff]
    %v1640 = vld [vmem:[%s8 + $0x28] sm:$0xff]
    %v1641 = vld [vmem:[%s8 + $0x30] sm:$0xff]
    %v1642 = vld [vmem:[%s8 + $0x38] sm:$0xff]
    %v1643 = vld [vmem:[%s8 + $0x40] sm:$0xff]
    %v1644 = vld [vmem:[%s8 + $0x48] sm:$0xff]
    %v1645 = vld [vmem:[%s8 + $0x50] sm:$0xff]
    %v1646 = vld [vmem:[%s8 + $0x58] sm:$0xff]
    %v1647 = vld [vmem:[%s8 + $0x60] sm:$0xff]
    %v1648 = vld [vmem:[%s8 + $0x68] sm:$0xff]
    %v1649 = vld [vmem:[%s8 + $0x70] sm:$0xff]
    %v1650 = vld [vmem:[%s8 + $0x78] sm:$0xff]
    %v1651 = vld [vmem:[%s8 + $0x80] sm:$0xff]
    %v1652 = vld [vmem:[%s8 + $0x88] sm:$0xff]
    %v1653 = vld [vmem:[%s8 + $0x90] sm:$0xff]
    %v1654 = vld [vmem:[%s8 + $0x98] sm:$0xff]
    %v1655 = vld [vmem:[%s8 + $0xa0] sm:$0xff]
    %v1656 = vld [vmem:[%s8 + $0xa8] sm:$0xff]
    %v1657 = vld [vmem:[%s8 + $0xb0] sm:$0xff]
    %v1658 = vld [vmem:[%s8 + $0xb8] sm:$0xff]
    %v1659 = vld [vmem:[%s8 + $0xc0] sm:$0xff]
    %v1660 = vld [vmem:[%s8 + $0xc8] sm:$0xff]
    %v1661 = vld [vmem:[%s8 + $0xd0] sm:$0xff]
    %v1662 = vld [vmem:[%s8 + $0xd8] sm:$0xff]
    %v1663 = vld [vmem:[%s8 + $0xe0] sm:$0xff]
    %v1664 = vld [vmem:[%s8 + $0xe8] sm:$0xff]
    %v1665 = vld [vmem:[%s8 + $0xf0] sm:$0xff]
    %v1666 = vld [vmem:[%s8 + $0xf8] sm:$0xff]
    %v1667 = vld [vmem:[%s9] sm:$0xff]
    %v1668 = vld [vmem:[%s9 + $0x8] sm:$0xff]
    %v1669 = vld [vmem:[%s9 + $0x10] sm:$0xff]
    %v1670 = vld [vmem:[%s9 + $0x18] sm:$0xff]
    %v1671 = vld [vmem:[%s9 + $0x20] sm:$0xff]
    %v1672 = vld [vmem:[%s9 + $0x28] sm:$0xff]
    %v1673 = vld [vmem:[%s9 + $0x30] sm:$0xff]
    %v1674 = vld [vmem:[%s9 + $0x38] sm:$0xff]
    %v1675 = vld [vmem:[%s9 + $0x40] sm:$0xff]
    %v1676 = vld [vmem:[%s9 + $0x48] sm:$0xff]
    %v1677 = vld [vmem:[%s9 + $0x50] sm:$0xff]
    %v1678 = vld [vmem:[%s9 + $0x58] sm:$0xff]
    %v1679 = vld [vmem:[%s9 + $0x60] sm:$0xff]
    %v1680 = vld [vmem:[%s9 + $0x68] sm:$0xff]
    %v1681 = vld [vmem:[%s9 + $0x70] sm:$0xff]
    %v1682 = vld [vmem:[%s9 + $0x78] sm:$0xff]
    %1684 = vset.pattern.permute.xlu0 0
    %1685 = vperm.xlu0 %1684, %v1667
    %v1686 = vpop.permute.xlu0 %1685
    %1689 = vset.pattern.permute.xlu0 0
    %1690 = vperm.xlu0 %1689, %v1668
    %v1691 = vpop.permute.xlu0 %1690
    %1694 = vset.pattern.permute.xlu0 0
    %1695 = vperm.xlu0 %1694, %v1669
    %v1696 = vpop.permute.xlu0 %1695
    %1699 = vset.pattern.permute.xlu0 0
    %1700 = vperm.xlu0 %1699, %v1670
    %v1701 = vpop.permute.xlu0 %1700
    %1704 = vset.pattern.permute.xlu0 0
    %1705 = vperm.xlu0 %1704, %v1671
    %v1706 = vpop.permute.xlu0 %1705
    %1709 = vset.pattern.permute.xlu0 0
    %1710 = vperm.xlu0 %1709, %v1672
    %v1711 = vpop.permute.xlu0 %1710
    %1714 = vset.pattern.permute.xlu0 0
    %1715 = vperm.xlu0 %1714, %v1673
    %v1716 = vpop.permute.xlu0 %1715
    %1719 = vset.pattern.permute.xlu0 0
    %1720 = vperm.xlu0 %1719, %v1674
    %v1721 = vpop.permute.xlu0 %1720
    %1724 = vset.pattern.permute.xlu0 0
    %1725 = vperm.xlu0 %1724, %v1675
    %v1726 = vpop.permute.xlu0 %1725
    %1729 = vset.pattern.permute.xlu0 0
    %1730 = vperm.xlu0 %1729, %v1676
    %v1731 = vpop.permute.xlu0 %1730
    %1734 = vset.pattern.permute.xlu0 0
    %1735 = vperm.xlu0 %1734, %v1677
    %v1736 = vpop.permute.xlu0 %1735
    %1739 = vset.pattern.permute.xlu0 0
    %1740 = vperm.xlu0 %1739, %v1678
    %v1741 = vpop.permute.xlu0 %1740
    %1744 = vset.pattern.permute.xlu0 0
    %1745 = vperm.xlu0 %1744, %v1679
    %v1746 = vpop.permute.xlu0 %1745
    %1749 = vset.pattern.permute.xlu0 0
    %1750 = vperm.xlu0 %1749, %v1680
    %v1751 = vpop.permute.xlu0 %1750
    %1754 = vset.pattern.permute.xlu0 0
    %1755 = vperm.xlu0 %1754, %v1681
    %v1756 = vpop.permute.xlu0 %1755
    %1759 = vset.pattern.permute.xlu0 0
    %1760 = vperm.xlu0 %1759, %v1682
    %v1761 = vpop.permute.xlu0 %1760
    %1763 = vmatprep.subr.mxu0 %v1209
    %1764 = vmatpush1.msra.mxu0 %v1208
    %1765 = vmatprep.subr.mxu0 %v1207
    %1766 = vmatpush1.msra.mxu0 %v1206
    %1767 = vmatprep.subr.mxu0 %v1205
    %1768 = vmatpush1.msra.mxu0 %v1204
    %1769 = vmatprep.subr.mxu0 %v1203
    %1770 = vmatpush1.msra.mxu0 %v1202
    %1771 = vmatprep.subr.mxu0 %v1201
    %1772 = vmatpush1.msra.mxu0 %v1200
    %1773 = vmatprep.subr.mxu0 %v1199
    %1774 = vmatpush1.msra.mxu0 %v1198
    %1775 = vmatprep.subr.mxu0 %v1197
    %1776 = vmatpush1.msra.mxu0 %v1196
    %1777 = vmatprep.subr.mxu0 %v1195
    %1778 = vmatpush1.msra.mxu0 %v1194
    %1779 = vmatprep.subr.mxu0 %v1193
    %1780 = vmatpush1.msra.mxu0 %v1192
    %1781 = vmatprep.subr.mxu0 %v1191
    %1782 = vmatpush1.msra.mxu0 %v1190
    %1783 = vmatprep.subr.mxu0 %v1189
    %1784 = vmatpush1.msra.mxu0 %v1188
    %1785 = vmatprep.subr.mxu0 %v1187
    %1786 = vmatpush1.msra.mxu0 %v1186
    %1787 = vmatprep.subr.mxu0 %v1185
    %1788 = vmatpush1.msra.mxu0 %v1184
    %1789 = vmatprep.subr.mxu0 %v1183
    %1790 = vmatpush1.msra.mxu0 %v1182
    %1791 = vmatprep.subr.mxu0 %v1181
    %1792 = vmatpush1.msra.mxu0 %v1180
    %1793 = vmatprep.subr.mxu0 %v1179
    %1794 = vmatpush1.msra.mxu0 %v1178
    %1795 = vmatprep.subr.mxu0 %v1634
    %1796 = vmatpush2.msra.mxu0 %v1633
    %1797 = vmatprep.subr.mxu0 %v1632
    %1798 = vmatpush2.msra.mxu0 %v1631
    %1799 = vmatprep.subr.mxu0 %v1630
    %1800 = vmatpush2.msra.mxu0 %v1629
    %1801 = vmatprep.subr.mxu0 %v1628
    %1802 = vmatpush2.msra.mxu0 %v1627
    %1803 = vmatprep.subr.mxu0 %v1626
    %1804 = vmatpush2.msra.mxu0 %v1625
    %1805 = vmatprep.subr.mxu0 %v1624
    %1806 = vmatpush2.msra.mxu0 %v1623
    %1807 = vmatprep.subr.mxu0 %v1622
    %1808 = vmatpush2.msra.mxu0 %v1621
    %1809 = vmatprep.subr.mxu0 %v1620
    %1810 = vmatpush2.msra.mxu0 %v1619
    %1811 = vmatprep.subr.mxu0 %v1618
    %1812 = vmatpush2.msra.mxu0 %v1617
    %1813 = vmatprep.subr.mxu0 %v1616
    %1814 = vmatpush2.msra.mxu0 %v1615
    %1815 = vmatprep.subr.mxu0 %v1614
    %1816 = vmatpush2.msra.mxu0 %v1613
    %1817 = vmatprep.subr.mxu0 %v1612
    %1818 = vmatpush2.msra.mxu0 %v1611
    %1819 = vmatprep.subr.mxu0 %v1610
    %1820 = vmatpush2.msra.mxu0 %v1609
    %1821 = vmatprep.subr.mxu0 %v1608
    %1822 = vmatpush2.msra.mxu0 %v1607
    %1823 = vmatprep.subr.mxu0 %v1606
    %1824 = vmatpush2.msra.mxu0 %v1605
    %1825 = vmatprep.subr.mxu0 %v1604
    %1826 = vmatpush2.msra.mxu0 %v1603
    %1827 = vmatprep.mubr.f32.mxu0 %v1636
    %1828 = vmatmul.mubr.f32.gmra.mxu0 %v1635
    %v1829 = vpop.f32.mrf.mxu0
    %v1830 = vadd.f32 %v1686, %v1829
    %v1831 = vpop.f32.mrf.mxu0
    %v1832 = vadd.f32 %v1686, %v1831
    %1833 = vmatprep.mubr.f32.mxu0 %v1638
    %1834 = vmatmul.mubr.f32.gmra.mxu0 %v1637
    %v1835 = vpop.f32.mrf.mxu0
    %v1836 = vadd.f32 %v1691, %v1835
    %v1837 = vpop.f32.mrf.mxu0
    %v1838 = vadd.f32 %v1691, %v1837
    %1839 = vmatprep.mubr.f32.mxu0 %v1640
    %1840 = vmatmul.mubr.f32.gmra.mxu0 %v1639
    %v1841 = vpop.f32.mrf.mxu0
    %v1842 = vadd.f32 %v1696, %v1841
    %v1843 = vpop.f32.mrf.mxu0
    %v1844 = vadd.f32 %v1696, %v1843
    %1845 = vmatprep.mubr.f32.mxu0 %v1642
    %1846 = vmatmul.mubr.f32.gmra.mxu0 %v1641
    %v1847 = vpop.f32.mrf.mxu0
    %v1848 = vadd.f32 %v1701, %v1847
    %v1849 = vpop.f32.mrf.mxu0
    %v1850 = vadd.f32 %v1701, %v1849
    %1851 = vmatprep.mubr.f32.mxu0 %v1644
    %1852 = vmatmul.mubr.f32.gmra.mxu0 %v1643
    %v1853 = vpop.f32.mrf.mxu0
    %v1854 = vadd.f32 %v1706, %v1853
    %v1855 = vpop.f32.mrf.mxu0
    %v1856 = vadd.f32 %v1706, %v1855
    %1857 = vmatprep.mubr.f32.mxu0 %v1646
    %1858 = vmatmul.mubr.f32.gmra.mxu0 %v1645
    %v1859 = vpop.f32.mrf.mxu0
    %v1860 = vadd.f32 %v1711, %v1859
    %v1861 = vpop.f32.mrf.mxu0
    %v1862 = vadd.f32 %v1711, %v1861
    %1863 = vmatprep.mubr.f32.mxu0 %v1648
    %1864 = vmatmul.mubr.f32.gmra.mxu0 %v1647
    %v1865 = vpop.f32.mrf.mxu0
    %v1866 = vadd.f32 %v1716, %v1865
    %v1867 = vpop.f32.mrf.mxu0
    %v1868 = vadd.f32 %v1716, %v1867
    %1869 = vmatprep.mubr.f32.mxu0 %v1650
    %1870 = vmatmul.mubr.f32.gmra.mxu0 %v1649
    %v1871 = vpop.f32.mrf.mxu0
    %v1872 = vadd.f32 %v1721, %v1871
    %v1873 = vpop.f32.mrf.mxu0
    %v1874 = vadd.f32 %v1721, %v1873
    %1875 = vmatprep.mubr.f32.mxu0 %v1652
    %1876 = vmatmul.mubr.f32.gmra.mxu0 %v1651
    %v1877 = vpop.f32.mrf.mxu0
    %v1878 = vadd.f32 %v1726, %v1877
    %v1879 = vpop.f32.mrf.mxu0
    %v1880 = vadd.f32 %v1726, %v1879
    %1881 = vmatprep.mubr.f32.mxu0 %v1654
    %1882 = vmatmul.mubr.f32.gmra.mxu0 %v1653
    %v1883 = vpop.f32.mrf.mxu0
    %v1884 = vadd.f32 %v1731, %v1883
    %v1885 = vpop.f32.mrf.mxu0
    %v1886 = vadd.f32 %v1731, %v1885
    %1887 = vmatprep.mubr.f32.mxu0 %v1656
    %1888 = vmatmul.mubr.f32.gmra.mxu0 %v1655
    %v1889 = vpop.f32.mrf.mxu0
    %v1890 = vadd.f32 %v1736, %v1889
    %v1891 = vpop.f32.mrf.mxu0
    %v1892 = vadd.f32 %v1736, %v1891
    %1893 = vmatprep.mubr.f32.mxu0 %v1658
    %1894 = vmatmul.mubr.f32.gmra.mxu0 %v1657
    %v1895 = vpop.f32.mrf.mxu0
    %v1896 = vadd.f32 %v1741, %v1895
    %v1897 = vpop.f32.mrf.mxu0
    %v1898 = vadd.f32 %v1741, %v1897
    %1899 = vmatprep.mubr.f32.mxu0 %v1660
    %1900 = vmatmul.mubr.f32.gmra.mxu0 %v1659
    %v1901 = vpop.f32.mrf.mxu0
    %v1902 = vadd.f32 %v1746, %v1901
    %v1903 = vpop.f32.mrf.mxu0
    %v1904 = vadd.f32 %v1746, %v1903
    %1905 = vmatprep.mubr.f32.mxu0 %v1662
    %1906 = vmatmul.mubr.f32.gmra.mxu0 %v1661
    %v1907 = vpop.f32.mrf.mxu0
    %v1908 = vadd.f32 %v1751, %v1907
    %v1909 = vpop.f32.mrf.mxu0
    %v1910 = vadd.f32 %v1751, %v1909
    %1911 = vmatprep.mubr.f32.mxu0 %v1664
    %1912 = vmatmul.mubr.f32.gmra.mxu0 %v1663
    %v1913 = vpop.f32.mrf.mxu0
    %v1914 = vadd.f32 %v1756, %v1913
    %v1915 = vpop.f32.mrf.mxu0
    %v1916 = vadd.f32 %v1756, %v1915
    %1917 = vmatprep.mubr.f32.mxu0 %v1666
    %1918 = vmatmul.mubr.f32.gmra.mxu0 %v1665
    %v1919 = vpop.f32.mrf.mxu0
    %v1920 = vadd.f32 %v1761, %v1919
    %v1921 = vpop.f32.mrf.mxu0
    %v1922 = vadd.f32 %v1761, %v1921
    %1923 = vdwg.mxu0
    %vm1924 = vcmp.gt.f32.partialorder %v1830, 0.0
    %vm1925 = vcmp.gt.f32.partialorder %v1832, 0.0
    %vm1926 = vcmp.gt.f32.partialorder %v1836, 0.0
    %vm1927 = vcmp.gt.f32.partialorder %v1838, 0.0
    %vm1928 = vcmp.gt.f32.partialorder %v1842, 0.0
    %vm1929 = vcmp.gt.f32.partialorder %v1844, 0.0
    %vm1930 = vcmp.gt.f32.partialorder %v1848, 0.0
    %vm1931 = vcmp.gt.f32.partialorder %v1850, 0.0
    %vm1932 = vcmp.gt.f32.partialorder %v1854, 0.0
    %vm1933 = vcmp.gt.f32.partialorder %v1856, 0.0
    %vm1934 = vcmp.gt.f32.partialorder %v1860, 0.0
    %vm1935 = vcmp.gt.f32.partialorder %v1862, 0.0
    %vm1936 = vcmp.gt.f32.partialorder %v1866, 0.0
    %vm1937 = vcmp.gt.f32.partialorder %v1868, 0.0
    %vm1938 = vcmp.gt.f32.partialorder %v1872, 0.0
    %vm1939 = vcmp.gt.f32.partialorder %v1874, 0.0
    %vm1940 = vcmp.gt.f32.partialorder %v1878, 0.0
    %vm1941 = vcmp.gt.f32.partialorder %v1880, 0.0
    %vm1942 = vcmp.gt.f32.partialorder %v1884, 0.0
    %vm1943 = vcmp.gt.f32.partialorder %v1886, 0.0
    %vm1944 = vcmp.gt.f32.partialorder %v1890, 0.0
    %vm1945 = vcmp.gt.f32.partialorder %v1892, 0.0
    %vm1946 = vcmp.gt.f32.partialorder %v1896, 0.0
    %vm1947 = vcmp.gt.f32.partialorder %v1898, 0.0
    %vm1948 = vcmp.gt.f32.partialorder %v1902, 0.0
    %vm1949 = vcmp.gt.f32.partialorder %v1904, 0.0
    %vm1950 = vcmp.gt.f32.partialorder %v1908, 0.0
    %vm1951 = vcmp.gt.f32.partialorder %v1910, 0.0
    %vm1952 = vcmp.gt.f32.partialorder %v1914, 0.0
    %vm1953 = vcmp.gt.f32.partialorder %v1916, 0.0
    %vm1954 = vcmp.gt.f32.partialorder %v1920, 0.0
    %vm1955 = vcmp.gt.f32.partialorder %v1922, 0.0
    %v1956 = vmul.f32 %v1830, 0.1
    %v1957 = vmul.f32 %v1832, 0.1
    %v1958 = vmul.f32 %v1836, 0.1
    %v1959 = vmul.f32 %v1838, 0.1
    %v1960 = vmul.f32 %v1842, 0.1
    %v1961 = vmul.f32 %v1844, 0.1
    %v1962 = vmul.f32 %v1848, 0.1
    %v1963 = vmul.f32 %v1850, 0.1
    %v1964 = vmul.f32 %v1854, 0.1
    %v1965 = vmul.f32 %v1856, 0.1
    %v1966 = vmul.f32 %v1860, 0.1
    %v1967 = vmul.f32 %v1862, 0.1
    %v1968 = vmul.f32 %v1866, 0.1
    %v1969 = vmul.f32 %v1868, 0.1
    %v1970 = vmul.f32 %v1872, 0.1
    %v1971 = vmul.f32 %v1874, 0.1
    %v1972 = vmul.f32 %v1878, 0.1
    %v1973 = vmul.f32 %v1880, 0.1
    %v1974 = vmul.f32 %v1884, 0.1
    %v1975 = vmul.f32 %v1886, 0.1
    %v1976 = vmul.f32 %v1890, 0.1
    %v1977 = vmul.f32 %v1892, 0.1
    %v1978 = vmul.f32 %v1896, 0.1
    %v1979 = vmul.f32 %v1898, 0.1
    %v1980 = vmul.f32 %v1902, 0.1
    %v1981 = vmul.f32 %v1904, 0.1
    %v1982 = vmul.f32 %v1908, 0.1
    %v1983 = vmul.f32 %v1910, 0.1
    %v1984 = vmul.f32 %v1914, 0.1
    %v1985 = vmul.f32 %v1916, 0.1
    %v1986 = vmul.f32 %v1920, 0.1
    %v1987 = vmul.f32 %v1922, 0.1
    %v1988 = vsel %vm1924, %v1830, %v1956
    %v1989 = vsel %vm1925, %v1832, %v1957
    %v1990 = vsel %vm1926, %v1836, %v1958
    %v1991 = vsel %vm1927, %v1838, %v1959
    %v1992 = vsel %vm1928, %v1842, %v1960
    %v1993 = vsel %vm1929, %v1844, %v1961
    %v1994 = vsel %vm1930, %v1848, %v1962
    %v1995 = vsel %vm1931, %v1850, %v1963
    %v1996 = vsel %vm1932, %v1854, %v1964
    %v1997 = vsel %vm1933, %v1856, %v1965
    %v1998 = vsel %vm1934, %v1860, %v1966
    %v1999 = vsel %vm1935, %v1862, %v1967
    %v2000 = vsel %vm1936, %v1866, %v1968
    %v2001 = vsel %vm1937, %v1868, %v1969
    %v2002 = vsel %vm1938, %v1872, %v1970
    %v2003 = vsel %vm1939, %v1874, %v1971
    %v2004 = vsel %vm1940, %v1878, %v1972
    %v2005 = vsel %vm1941, %v1880, %v1973
    %v2006 = vsel %vm1942, %v1884, %v1974
    %v2007 = vsel %vm1943, %v1886, %v1975
    %v2008 = vsel %vm1944, %v1890, %v1976
    %v2009 = vsel %vm1945, %v1892, %v1977
    %v2010 = vsel %vm1946, %v1896, %v1978
    %v2011 = vsel %vm1947, %v1898, %v1979
    %v2012 = vsel %vm1948, %v1902, %v1980
    %v2013 = vsel %vm1949, %v1904, %v1981
    %v2014 = vsel %vm1950, %v1908, %v1982
    %v2015 = vsel %vm1951, %v1910, %v1983
    %v2016 = vsel %vm1952, %v1914, %v1984
    %v2017 = vsel %vm1953, %v1916, %v1985
    %v2018 = vsel %vm1954, %v1920, %v1986
    %v2019 = vsel %vm1955, %v1922, %v1987
    %v2020 = vld [vmem:[%s10] sm:$0xff]
    %v2021 = vld [vmem:[%s10 + $0x8] sm:$0xff]
    %v2022 = vld [vmem:[%s10 + $0x10] sm:$0xff]
    %v2023 = vld [vmem:[%s10 + $0x18] sm:$0xff]
    %v2024 = vld [vmem:[%s10 + $0x20] sm:$0xff]
    %v2025 = vld [vmem:[%s10 + $0x28] sm:$0xff]
    %v2026 = vld [vmem:[%s10 + $0x30] sm:$0xff]
    %v2027 = vld [vmem:[%s10 + $0x38] sm:$0xff]
    %v2028 = vld [vmem:[%s10 + $0x40] sm:$0xff]
    %v2029 = vld [vmem:[%s10 + $0x48] sm:$0xff]
    %v2030 = vld [vmem:[%s10 + $0x50] sm:$0xff]
    %v2031 = vld [vmem:[%s10 + $0x58] sm:$0xff]
    %v2032 = vld [vmem:[%s10 + $0x60] sm:$0xff]
    %v2033 = vld [vmem:[%s10 + $0x68] sm:$0xff]
    %v2034 = vld [vmem:[%s10 + $0x70] sm:$0xff]
    %v2035 = vld [vmem:[%s10 + $0x78] sm:$0xff]
    %v2036 = vld [vmem:[%s11] sm:$0xff]
    %v2037 = vld [vmem:[%s11 + $0x8] sm:$0xff]
    %v2038 = vld [vmem:[%s11 + $0x10] sm:$0xff]
    %v2039 = vld [vmem:[%s11 + $0x18] sm:$0xff]
    %v2040 = vld [vmem:[%s11 + $0x20] sm:$0xff]
    %v2041 = vld [vmem:[%s11 + $0x28] sm:$0xff]
    %v2042 = vld [vmem:[%s11 + $0x30] sm:$0xff]
    %v2043 = vld [vmem:[%s11 + $0x38] sm:$0xff]
    %v2044 = vld [vmem:[%s11 + $0x40] sm:$0xff]
    %v2045 = vld [vmem:[%s11 + $0x48] sm:$0xff]
    %v2046 = vld [vmem:[%s11 + $0x50] sm:$0xff]
    %v2047 = vld [vmem:[%s11 + $0x58] sm:$0xff]
    %v2048 = vld [vmem:[%s11 + $0x60] sm:$0xff]
    %v2049 = vld [vmem:[%s11 + $0x68] sm:$0xff]
    %v2050 = vld [vmem:[%s11 + $0x70] sm:$0xff]
    %v2051 = vld [vmem:[%s11 + $0x78] sm:$0xff]
    %2053 = vset.pattern.permute.xlu0 0
    %2054 = vperm.xlu0 %2053, %v2036
    %v2055 = vpop.permute.xlu0 %2054
    %2058 = vset.pattern.permute.xlu0 0
    %2059 = vperm.xlu0 %2058, %v2037
    %v2060 = vpop.permute.xlu0 %2059
    %2063 = vset.pattern.permute.xlu0 0
    %2064 = vperm.xlu0 %2063, %v2038
    %v2065 = vpop.permute.xlu0 %2064
    %2068 = vset.pattern.permute.xlu0 0
    %2069 = vperm.xlu0 %2068, %v2039
    %v2070 = vpop.permute.xlu0 %2069
    %2073 = vset.pattern.permute.xlu0 0
    %2074 = vperm.xlu0 %2073, %v2040
    %v2075 = vpop.permute.xlu0 %2074
    %2078 = vset.pattern.permute.xlu0 0
    %2079 = vperm.xlu0 %2078, %v2041
    %v2080 = vpop.permute.xlu0 %2079
    %2083 = vset.pattern.permute.xlu0 0
    %2084 = vperm.xlu0 %2083, %v2042
    %v2085 = vpop.permute.xlu0 %2084
    %2088 = vset.pattern.permute.xlu0 0
    %2089 = vperm.xlu0 %2088, %v2043
    %v2090 = vpop.permute.xlu0 %2089
    %2093 = vset.pattern.permute.xlu0 0
    %2094 = vperm.xlu0 %2093, %v2044
    %v2095 = vpop.permute.xlu0 %2094
    %2098 = vset.pattern.permute.xlu0 0
    %2099 = vperm.xlu0 %2098, %v2045
    %v2100 = vpop.permute.xlu0 %2099
    %2103 = vset.pattern.permute.xlu0 0
    %2104 = vperm.xlu0 %2103, %v2046
    %v2105 = vpop.permute.xlu0 %2104
    %2108 = vset.pattern.permute.xlu0 0
    %2109 = vperm.xlu0 %2108, %v2047
    %v2110 = vpop.permute.xlu0 %2109
    %2113 = vset.pattern.permute.xlu0 0
    %2114 = vperm.xlu0 %2113, %v2048
    %v2115 = vpop.permute.xlu0 %2114
    %2118 = vset.pattern.permute.xlu0 0
    %2119 = vperm.xlu0 %2118, %v2049
    %v2120 = vpop.permute.xlu0 %2119
    %2123 = vset.pattern.permute.xlu0 0
    %2124 = vperm.xlu0 %2123, %v2050
    %v2125 = vpop.permute.xlu0 %2124
    %2128 = vset.pattern.permute.xlu0 0
    %2129 = vperm.xlu0 %2128, %v2051
    %v2130 = vpop.permute.xlu0 %2129
    %2132 = vmatprep.subr.mxu0 %v2019
    %2133 = vmatpush1.msra.mxu0 %v2018
    %2134 = vmatprep.subr.mxu0 %v2017
    %2135 = vmatpush1.msra.mxu0 %v2016
    %2136 = vmatprep.subr.mxu0 %v2015
    %2137 = vmatpush1.msra.mxu0 %v2014
    %2138 = vmatprep.subr.mxu0 %v2013
    %2139 = vmatpush1.msra.mxu0 %v2012
    %2140 = vmatprep.subr.mxu0 %v2011
    %2141 = vmatpush1.msra.mxu0 %v2010
    %2142 = vmatprep.subr.mxu0 %v2009
    %2143 = vmatpush1.msra.mxu0 %v2008
    %2144 = vmatprep.subr.mxu0 %v2007
    %2145 = vmatpush1.msra.mxu0 %v2006
    %2146 = vmatprep.subr.mxu0 %v2005
    %2147 = vmatpush1.msra.mxu0 %v2004
    %2148 = vmatprep.subr.mxu0 %v2003
    %2149 = vmatpush1.msra.mxu0 %v2002
    %2150 = vmatprep.subr.mxu0 %v2001
    %2151 = vmatpush1.msra.mxu0 %v2000
    %2152 = vmatprep.subr.mxu0 %v1999
    %2153 = vmatpush1.msra.mxu0 %v1998
    %2154 = vmatprep.subr.mxu0 %v1997
    %2155 = vmatpush1.msra.mxu0 %v1996
    %2156 = vmatprep.subr.mxu0 %v1995
    %2157 = vmatpush1.msra.mxu0 %v1994
    %2158 = vmatprep.subr.mxu0 %v1993
    %2159 = vmatpush1.msra.mxu0 %v1992
    %2160 = vmatprep.subr.mxu0 %v1991
    %2161 = vmatpush1.msra.mxu0 %v1990
    %2162 = vmatprep.subr.mxu0 %v1989
    %2163 = vmatpush1.msra.mxu0 %v1988
    %2164 = vmatprep.subr.mxu0 0.0
    %2165 = vmatpush2.msra.mxu0 0.0
    %2166 = vmatprep.subr.mxu0 0.0
    %2167 = vmatpush2.msra.mxu0 0.0
    %2168 = vmatprep.subr.mxu0 0.0
    %2169 = vmatpush2.msra.mxu0 0.0
    %2170 = vmatprep.subr.mxu0 0.0
    %2171 = vmatpush2.msra.mxu0 0.0
    %2172 = vmatprep.subr.mxu0 0.0
    %2173 = vmatpush2.msra.mxu0 0.0
    %2174 = vmatprep.subr.mxu0 0.0
    %2175 = vmatpush2.msra.mxu0 0.0
    %2176 = vmatprep.subr.mxu0 0.0
    %2177 = vmatpush2.msra.mxu0 0.0
    %2178 = vmatprep.subr.mxu0 0.0
    %2179 = vmatpush2.msra.mxu0 0.0
    %2180 = vmatprep.subr.mxu0 0.0
    %2181 = vmatpush2.msra.mxu0 0.0
    %2182 = vmatprep.subr.mxu0 0.0
    %2183 = vmatpush2.msra.mxu0 0.0
    %2184 = vmatprep.subr.mxu0 0.0
    %2185 = vmatpush2.msra.mxu0 0.0
    %2186 = vmatprep.subr.mxu0 0.0
    %2187 = vmatpush2.msra.mxu0 0.0
    %2188 = vmatprep.subr.mxu0 0.0
    %2189 = vmatpush2.msra.mxu0 0.0
    %2190 = vmatprep.subr.mxu0 0.0
    %2191 = vmatpush2.msra.mxu0 0.0
    %2192 = vmatprep.subr.mxu0 0.0
    %2193 = vmatpush2.msra.mxu0 0.0
    %2194 = vmatprep.subr.mxu0 0.0
    %2195 = vmatpush2.msra.mxu0 0.0
    %2196 = vmatprep.mubr.f32.mxu0 0.0
    %2197 = vmatmul.mubr.f32.gmra.mxu0 %v2020
    %v2198 = vpop.f32.mrf.mxu0
    %v2199 = vadd.f32 %v2055, %v2198
    %v2200 = vpop.f32.mrf.mxu0
    %v2201 = vadd.f32 %v2055, %v2200
    %2202 = vmatprep.mubr.f32.mxu0 0.0
    %2203 = vmatmul.mubr.f32.gmra.mxu0 %v2021
    %v2204 = vpop.f32.mrf.mxu0
    %v2205 = vadd.f32 %v2060, %v2204
    %v2206 = vpop.f32.mrf.mxu0
    %v2207 = vadd.f32 %v2060, %v2206
    %2208 = vmatprep.mubr.f32.mxu0 0.0
    %2209 = vmatmul.mubr.f32.gmra.mxu0 %v2022
    %v2210 = vpop.f32.mrf.mxu0
    %v2211 = vadd.f32 %v2065, %v2210
    %v2212 = vpop.f32.mrf.mxu0
    %v2213 = vadd.f32 %v2065, %v2212
    %2214 = vmatprep.mubr.f32.mxu0 0.0
    %2215 = vmatmul.mubr.f32.gmra.mxu0 %v2023
    %v2216 = vpop.f32.mrf.mxu0
    %v2217 = vadd.f32 %v2070, %v2216
    %v2218 = vpop.f32.mrf.mxu0
    %v2219 = vadd.f32 %v2070, %v2218
    %2220 = vmatprep.mubr.f32.mxu0 0.0
    %2221 = vmatmul.mubr.f32.gmra.mxu0 %v2024
    %v2222 = vpop.f32.mrf.mxu0
    %v2223 = vadd.f32 %v2075, %v2222
    %v2224 = vpop.f32.mrf.mxu0
    %v2225 = vadd.f32 %v2075, %v2224
    %2226 = vmatprep.mubr.f32.mxu0 0.0
    %2227 = vmatmul.mubr.f32.gmra.mxu0 %v2025
    %v2228 = vpop.f32.mrf.mxu0
    %v2229 = vadd.f32 %v2080, %v2228
    %v2230 = vpop.f32.mrf.mxu0
    %v2231 = vadd.f32 %v2080, %v2230
    %2232 = vmatprep.mubr.f32.mxu0 0.0
    %2233 = vmatmul.mubr.f32.gmra.mxu0 %v2026
    %v2234 = vpop.f32.mrf.mxu0
    %v2235 = vadd.f32 %v2085, %v2234
    %v2236 = vpop.f32.mrf.mxu0
    %v2237 = vadd.f32 %v2085, %v2236
    %2238 = vmatprep.mubr.f32.mxu0 0.0
    %2239 = vmatmul.mubr.f32.gmra.mxu0 %v2027
    %v2240 = vpop.f32.mrf.mxu0
    %v2241 = vadd.f32 %v2090, %v2240
    %v2242 = vpop.f32.mrf.mxu0
    %v2243 = vadd.f32 %v2090, %v2242
    %2244 = vmatprep.mubr.f32.mxu0 0.0
    %2245 = vmatmul.mubr.f32.gmra.mxu0 %v2028
    %v2246 = vpop.f32.mrf.mxu0
    %v2247 = vadd.f32 %v2095, %v2246
    %v2248 = vpop.f32.mrf.mxu0
    %v2249 = vadd.f32 %v2095, %v2248
    %2250 = vmatprep.mubr.f32.mxu0 0.0
    %2251 = vmatmul.mubr.f32.gmra.mxu0 %v2029
    %v2252 = vpop.f32.mrf.mxu0
    %v2253 = vadd.f32 %v2100, %v2252
    %v2254 = vpop.f32.mrf.mxu0
    %v2255 = vadd.f32 %v2100, %v2254
    %2256 = vmatprep.mubr.f32.mxu0 0.0
    %2257 = vmatmul.mubr.f32.gmra.mxu0 %v2030
    %v2258 = vpop.f32.mrf.mxu0
    %v2259 = vadd.f32 %v2105, %v2258
    %v2260 = vpop.f32.mrf.mxu0
    %v2261 = vadd.f32 %v2105, %v2260
    %2262 = vmatprep.mubr.f32.mxu0 0.0
    %2263 = vmatmul.mubr.f32.gmra.mxu0 %v2031
    %v2264 = vpop.f32.mrf.mxu0
    %v2265 = vadd.f32 %v2110, %v2264
    %v2266 = vpop.f32.mrf.mxu0
    %v2267 = vadd.f32 %v2110, %v2266
    %2268 = vmatprep.mubr.f32.mxu0 0.0
    %2269 = vmatmul.mubr.f32.gmra.mxu0 %v2032
    %v2270 = vpop.f32.mrf.mxu0
    %v2271 = vadd.f32 %v2115, %v2270
    %v2272 = vpop.f32.mrf.mxu0
    %v2273 = vadd.f32 %v2115, %v2272
    %2274 = vmatprep.mubr.f32.mxu0 0.0
    %2275 = vmatmul.mubr.f32.gmra.mxu0 %v2033
    %v2276 = vpop.f32.mrf.mxu0
    %v2277 = vadd.f32 %v2120, %v2276
    %v2278 = vpop.f32.mrf.mxu0
    %v2279 = vadd.f32 %v2120, %v2278
    %2280 = vmatprep.mubr.f32.mxu0 0.0
    %2281 = vmatmul.mubr.f32.gmra.mxu0 %v2034
    %v2282 = vpop.f32.mrf.mxu0
    %v2283 = vadd.f32 %v2125, %v2282
    %v2284 = vpop.f32.mrf.mxu0
    %v2285 = vadd.f32 %v2125, %v2284
    %2286 = vmatprep.mubr.f32.mxu0 0.0
    %2287 = vmatmul.mubr.f32.gmra.mxu0 %v2035
    %v2288 = vpop.f32.mrf.mxu0
    %v2289 = vadd.f32 %v2130, %v2288
    %v2290 = vpop.f32.mrf.mxu0
    %v2291 = vadd.f32 %v2130, %v2290
    %2292 = vdwg.mxu0
    %vm2293 = vcmp.gt.f32.partialorder %v2199, 0.0
    %vm2294 = vcmp.gt.f32.partialorder %v2201, 0.0
    %vm2295 = vcmp.gt.f32.partialorder %v2205, 0.0
    %vm2296 = vcmp.gt.f32.partialorder %v2207, 0.0
    %vm2297 = vcmp.gt.f32.partialorder %v2211, 0.0
    %vm2298 = vcmp.gt.f32.partialorder %v2213, 0.0
    %vm2299 = vcmp.gt.f32.partialorder %v2217, 0.0
    %vm2300 = vcmp.gt.f32.partialorder %v2219, 0.0
    %vm2301 = vcmp.gt.f32.partialorder %v2223, 0.0
    %vm2302 = vcmp.gt.f32.partialorder %v2225, 0.0
    %vm2303 = vcmp.gt.f32.partialorder %v2229, 0.0
    %vm2304 = vcmp.gt.f32.partialorder %v2231, 0.0
    %vm2305 = vcmp.gt.f32.partialorder %v2235, 0.0
    %vm2306 = vcmp.gt.f32.partialorder %v2237, 0.0
    %vm2307 = vcmp.gt.f32.partialorder %v2241, 0.0
    %vm2308 = vcmp.gt.f32.partialorder %v2243, 0.0
    %vm2309 = vcmp.gt.f32.partialorder %v2247, 0.0
    %vm2310 = vcmp.gt.f32.partialorder %v2249, 0.0
    %vm2311 = vcmp.gt.f32.partialorder %v2253, 0.0
    %vm2312 = vcmp.gt.f32.partialorder %v2255, 0.0
    %vm2313 = vcmp.gt.f32.partialorder %v2259, 0.0
    %vm2314 = vcmp.gt.f32.partialorder %v2261, 0.0
    %vm2315 = vcmp.gt.f32.partialorder %v2265, 0.0
    %vm2316 = vcmp.gt.f32.partialorder %v2267, 0.0
    %vm2317 = vcmp.gt.f32.partialorder %v2271, 0.0
    %vm2318 = vcmp.gt.f32.partialorder %v2273, 0.0
    %vm2319 = vcmp.gt.f32.partialorder %v2277, 0.0
    %vm2320 = vcmp.gt.f32.partialorder %v2279, 0.0
    %vm2321 = vcmp.gt.f32.partialorder %v2283, 0.0
    %vm2322 = vcmp.gt.f32.partialorder %v2285, 0.0
    %vm2323 = vcmp.gt.f32.partialorder %v2289, 0.0
    %vm2324 = vcmp.gt.f32.partialorder %v2291, 0.0
    %v2325 = vmul.f32 %v2199, 0.1
    %v2326 = vmul.f32 %v2201, 0.1
    %v2327 = vmul.f32 %v2205, 0.1
    %v2328 = vmul.f32 %v2207, 0.1
    %v2329 = vmul.f32 %v2211, 0.1
    %v2330 = vmul.f32 %v2213, 0.1
    %v2331 = vmul.f32 %v2217, 0.1
    %v2332 = vmul.f32 %v2219, 0.1
    %v2333 = vmul.f32 %v2223, 0.1
    %v2334 = vmul.f32 %v2225, 0.1
    %v2335 = vmul.f32 %v2229, 0.1
    %v2336 = vmul.f32 %v2231, 0.1
    %v2337 = vmul.f32 %v2235, 0.1
    %v2338 = vmul.f32 %v2237, 0.1
    %v2339 = vmul.f32 %v2241, 0.1
    %v2340 = vmul.f32 %v2243, 0.1
    %v2341 = vmul.f32 %v2247, 0.1
    %v2342 = vmul.f32 %v2249, 0.1
    %v2343 = vmul.f32 %v2253, 0.1
    %v2344 = vmul.f32 %v2255, 0.1
    %v2345 = vmul.f32 %v2259, 0.1
    %v2346 = vmul.f32 %v2261, 0.1
    %v2347 = vmul.f32 %v2265, 0.1
    %v2348 = vmul.f32 %v2267, 0.1
    %v2349 = vmul.f32 %v2271, 0.1
    %v2350 = vmul.f32 %v2273, 0.1
    %v2351 = vmul.f32 %v2277, 0.1
    %v2352 = vmul.f32 %v2279, 0.1
    %v2353 = vmul.f32 %v2283, 0.1
    %v2354 = vmul.f32 %v2285, 0.1
    %v2355 = vmul.f32 %v2289, 0.1
    %v2356 = vmul.f32 %v2291, 0.1
    %v2357 = vsel %vm2293, %v2199, %v2325
    %v2358 = vsel %vm2294, %v2201, %v2326
    %v2359 = vsel %vm2295, %v2205, %v2327
    %v2360 = vsel %vm2296, %v2207, %v2328
    %v2361 = vsel %vm2297, %v2211, %v2329
    %v2362 = vsel %vm2298, %v2213, %v2330
    %v2363 = vsel %vm2299, %v2217, %v2331
    %v2364 = vsel %vm2300, %v2219, %v2332
    %v2365 = vsel %vm2301, %v2223, %v2333
    %v2366 = vsel %vm2302, %v2225, %v2334
    %v2367 = vsel %vm2303, %v2229, %v2335
    %v2368 = vsel %vm2304, %v2231, %v2336
    %v2369 = vsel %vm2305, %v2235, %v2337
    %v2370 = vsel %vm2306, %v2237, %v2338
    %v2371 = vsel %vm2307, %v2241, %v2339
    %v2372 = vsel %vm2308, %v2243, %v2340
    %v2373 = vsel %vm2309, %v2247, %v2341
    %v2374 = vsel %vm2310, %v2249, %v2342
    %v2375 = vsel %vm2311, %v2253, %v2343
    %v2376 = vsel %vm2312, %v2255, %v2344
    %v2377 = vsel %vm2313, %v2259, %v2345
    %v2378 = vsel %vm2314, %v2261, %v2346
    %v2379 = vsel %vm2315, %v2265, %v2347
    %v2380 = vsel %vm2316, %v2267, %v2348
    %v2381 = vsel %vm2317, %v2271, %v2349
    %v2382 = vsel %vm2318, %v2273, %v2350
    %v2383 = vsel %vm2319, %v2277, %v2351
    %v2384 = vsel %vm2320, %v2279, %v2352
    %v2385 = vsel %vm2321, %v2283, %v2353
    %v2386 = vsel %vm2322, %v2285, %v2354
    %v2387 = vsel %vm2323, %v2289, %v2355
    %v2388 = vsel %vm2324, %v2291, %v2356
    %v2389 = vld [vmem:[%s12] sm:$0xff]
    %v2390 = vld [vmem:[%s12 + $0x8] sm:$0xff]
    %v2391 = vld [vmem:[%s12 + $0x10] sm:$0xff]
    %v2392 = vld [vmem:[%s12 + $0x18] sm:$0xff]
    %v2393 = vld [vmem:[%s12 + $0x20] sm:$0xff]
    %v2394 = vld [vmem:[%s12 + $0x28] sm:$0xff]
    %v2395 = vld [vmem:[%s12 + $0x30] sm:$0xff]
    %v2396 = vld [vmem:[%s12 + $0x38] sm:$0xff]
    %v2397 = vld [vmem:[%s12 + $0x40] sm:$0xff]
    %v2398 = vld [vmem:[%s12 + $0x48] sm:$0xff]
    %v2399 = vld [vmem:[%s12 + $0x50] sm:$0xff]
    %v2400 = vld [vmem:[%s12 + $0x58] sm:$0xff]
    %v2401 = vld [vmem:[%s12 + $0x60] sm:$0xff]
    %v2402 = vld [vmem:[%s12 + $0x68] sm:$0xff]
    %v2403 = vld [vmem:[%s12 + $0x70] sm:$0xff]
    %v2404 = vld [vmem:[%s12 + $0x78] sm:$0xff]
    %2406 = vset.pattern.permute.xlu0 0
    %2407 = vperm.xlu0 %2406, %v2389
    %v2408 = vpop.permute.xlu0 %2407
    %2411 = vset.pattern.permute.xlu0 0
    %2412 = vperm.xlu0 %2411, %v2390
    %v2413 = vpop.permute.xlu0 %2412
    %2416 = vset.pattern.permute.xlu0 0
    %2417 = vperm.xlu0 %2416, %v2391
    %v2418 = vpop.permute.xlu0 %2417
    %2421 = vset.pattern.permute.xlu0 0
    %2422 = vperm.xlu0 %2421, %v2392
    %v2423 = vpop.permute.xlu0 %2422
    %2426 = vset.pattern.permute.xlu0 0
    %2427 = vperm.xlu0 %2426, %v2393
    %v2428 = vpop.permute.xlu0 %2427
    %2431 = vset.pattern.permute.xlu0 0
    %2432 = vperm.xlu0 %2431, %v2394
    %v2433 = vpop.permute.xlu0 %2432
    %2436 = vset.pattern.permute.xlu0 0
    %2437 = vperm.xlu0 %2436, %v2395
    %v2438 = vpop.permute.xlu0 %2437
    %2441 = vset.pattern.permute.xlu0 0
    %2442 = vperm.xlu0 %2441, %v2396
    %v2443 = vpop.permute.xlu0 %2442
    %2446 = vset.pattern.permute.xlu0 0
    %2447 = vperm.xlu0 %2446, %v2397
    %v2448 = vpop.permute.xlu0 %2447
    %2451 = vset.pattern.permute.xlu0 0
    %2452 = vperm.xlu0 %2451, %v2398
    %v2453 = vpop.permute.xlu0 %2452
    %2456 = vset.pattern.permute.xlu0 0
    %2457 = vperm.xlu0 %2456, %v2399
    %v2458 = vpop.permute.xlu0 %2457
    %2461 = vset.pattern.permute.xlu0 0
    %2462 = vperm.xlu0 %2461, %v2400
    %v2463 = vpop.permute.xlu0 %2462
    %2466 = vset.pattern.permute.xlu0 0
    %2467 = vperm.xlu0 %2466, %v2401
    %v2468 = vpop.permute.xlu0 %2467
    %2471 = vset.pattern.permute.xlu0 0
    %2472 = vperm.xlu0 %2471, %v2402
    %v2473 = vpop.permute.xlu0 %2472
    %2476 = vset.pattern.permute.xlu0 0
    %2477 = vperm.xlu0 %2476, %v2403
    %v2478 = vpop.permute.xlu0 %2477
    %2481 = vset.pattern.permute.xlu0 0
    %2482 = vperm.xlu0 %2481, %v2404
    %v2483 = vpop.permute.xlu0 %2482
    %v2485 = vmul.f32 %v2357, %v2408
    %v2486 = vmul.f32 %v2358, %v2408
    %v2487 = vmul.f32 %v2359, %v2413
    %v2488 = vmul.f32 %v2360, %v2413
    %v2489 = vmul.f32 %v2361, %v2418
    %v2490 = vmul.f32 %v2362, %v2418
    %v2491 = vmul.f32 %v2363, %v2423
    %v2492 = vmul.f32 %v2364, %v2423
    %v2493 = vmul.f32 %v2365, %v2428
    %v2494 = vmul.f32 %v2366, %v2428
    %v2495 = vmul.f32 %v2367, %v2433
    %v2496 = vmul.f32 %v2368, %v2433
    %v2497 = vmul.f32 %v2369, %v2438
    %v2498 = vmul.f32 %v2370, %v2438
    %v2499 = vmul.f32 %v2371, %v2443
    %v2500 = vmul.f32 %v2372, %v2443
    %v2501 = vmul.f32 %v2373, %v2448
    %v2502 = vmul.f32 %v2374, %v2448
    %v2503 = vmul.f32 %v2375, %v2453
    %v2504 = vmul.f32 %v2376, %v2453
    %v2505 = vmul.f32 %v2377, %v2458
    %v2506 = vmul.f32 %v2378, %v2458
    %v2507 = vmul.f32 %v2379, %v2463
    %v2508 = vmul.f32 %v2380, %v2463
    %v2509 = vmul.f32 %v2381, %v2468
    %v2510 = vmul.f32 %v2382, %v2468
    %v2511 = vmul.f32 %v2383, %v2473
    %v2512 = vmul.f32 %v2384, %v2473
    %v2513 = vmul.f32 %v2385, %v2478
    %v2514 = vmul.f32 %v2386, %v2478
    %v2515 = vmul.f32 %v2387, %v2483
    %v2516 = vmul.f32 %v2388, %v2483
    %v2517 = vadd.f32 %v2485, %v2487
    %v2518 = vadd.f32 %v2517, %v2489
    %v2519 = vadd.f32 %v2518, %v2491
    %v2520 = vadd.f32 %v2519, %v2493
    %v2521 = vadd.f32 %v2520, %v2495
    %v2522 = vadd.f32 %v2521, %v2497
    %v2523 = vadd.f32 %v2522, %v2499
    %v2524 = vadd.f32 %v2523, %v2501
    %v2525 = vadd.f32 %v2524, %v2503
    %v2526 = vadd.f32 %v2525, %v2505
    %v2527 = vadd.f32 %v2526, %v2507
    %v2528 = vadd.f32 %v2527, %v2509
    %v2529 = vadd.f32 %v2528, %v2511
    %v2530 = vadd.f32 %v2529, %v2513
    %v2531 = vadd.f32 %v2530, %v2515
    %v2532 = vrot.slane %v2531, 4
    %v2533 = vadd.f32 %v2531, %v2532
    %v2534 = vrot.slane %v2533, 2
    %v2535 = vadd.f32 %v2533, %v2534
    %v2536 = vrot.slane %v2535, 1
    %v2537 = vadd.f32 %v2535, %v2536
    %v2538 = vadd.f32 %v2486, %v2488
    %v2539 = vadd.f32 %v2538, %v2490
    %v2540 = vadd.f32 %v2539, %v2492
    %v2541 = vadd.f32 %v2540, %v2494
    %v2542 = vadd.f32 %v2541, %v2496
    %v2543 = vadd.f32 %v2542, %v2498
    %v2544 = vadd.f32 %v2543, %v2500
    %v2545 = vadd.f32 %v2544, %v2502
    %v2546 = vadd.f32 %v2545, %v2504
    %v2547 = vadd.f32 %v2546, %v2506
    %v2548 = vadd.f32 %v2547, %v2508
    %v2549 = vadd.f32 %v2548, %v2510
    %v2550 = vadd.f32 %v2549, %v2512
    %v2551 = vadd.f32 %v2550, %v2514
    %v2552 = vadd.f32 %v2551, %v2516
    %v2553 = vrot.slane %v2552, 4
    %v2554 = vadd.f32 %v2552, %v2553
    %v2555 = vrot.slane %v2554, 2
    %v2556 = vadd.f32 %v2554, %v2555
    %v2557 = vrot.slane %v2556, 1
    %v2558 = vadd.f32 %v2556, %v2557
    %v2559 = vld [vmem:[#allocation2] sm:$0x1]
    %2561 = vset.pattern.permute.xlu0 0
    %2562 = vperm.xlu0 %2561, %v2559
    %v2563 = vpop.permute.xlu0 %2562
    %v2565 = vlaneseq
    %v2566 = vshrl.u32 %v2565, 7
    %v2567 = vsub.s32 0, %v2566
    %v2568 = vrot.slane %v2563, %v2567
    %v2569 = vadd.f32 %v2537, %v2568
    %v2570 = vadd.f32 %v2558, %v2568
    %v2573 = vcombine.low %v2569, %v2570
    %v2575 = vunpack.c.l.s4 1966171168
    %v2576 = vunpack.c.0.s8 %v2575
    %v2577 = vlaneseq
    %v2578 = vshrl.u32 %v2577, 7
    %v2579 = vsub.s32 %v2576, %v2578
    %v2580 = vrot.slane %v2573, %v2579
    %v2582 = vunpack.c.l.s4 1966171168
    %v2583 = vunpack.c.0.s8 %v2582
    %v2584 = vlaneseq
    %v2585 = vshrl.u32 %v2584, 7
    %v2586 = vsub.s32 %v2583, %v2585
    %v2587 = vrot.slane %v2580, %v2586
    %v2589 = vlaneseq
    %vm2590 = vcmp.ge.s32.totalorder %v2589, 0
    %vm2591 = vcmp.lt.s32.totalorder %v2589, 256
    %vm2592 = vmand %vm2590, %vm2591
    %2593 = vst.msk [vmem:[#allocation3] sm:$0x3] %vm2592, %v2587
    // Predicated region
    $region58: #{tpu_custom_call.1} parent=1 // pred_check
      _
    $region59: #{tpu_custom_call.1} parent=1 // pred_check_branch
      %2595 = sbr.rel (0) target = $region61
    $region60: #{tpu_custom_call.1} parent=1 // pred_region
      %s2597 = ssub.s32 32, 32
      %2598 = vsyncadd [#allocation4], %s2597
      %s2600 = sshll.u32 [#allocation3], 4
      %s2601 = int_to_ptr.vmem [resolvable:$true] %s2600
      %2603 = dma.vmem_to_hbm [thread:$0]  %s2601, 32, %s14, [#allocation4]
    $region61: #{tpu_custom_call.1} parent=1 // pred_fallthru
      _
    // Predicated region
    $region62: #{tpu_custom_call.1} parent=1 // pred_check
      _
    $region63: #{tpu_custom_call.1} parent=1 // pred_check_branch
      %2605 = sbr.rel (0) target = $region65
    $region64: #{tpu_custom_call.1} parent=1 // pred_region
      %2606 = dma.done [#allocation4], 32
    $region65: #{tpu_custom_call.1} parent=1 // pred_fallthru
      _
    %2607 = vsyncpa [#allocation4], 1

</llo_original>
